<compile_context>
chip_gen: v7x
topology: tpu7x:2x2x1
jax: 0.10.0
libtpu: 0.0.40
codegen_flags: <defaults>
</compile_context>

<pallas_src>
import jax
import jax.numpy as jnp
from jax import lax
from jax.experimental import pallas as pl
from jax.experimental.pallas import tpu as pltpu


def camcnn_kernel(x1p_ref, xs_ref, w1p_ref, b1_ref, w2p_ref, b2_ref,
                  wlg_ref, wls_ref, bl_ref,
                  logits_ref, fmap_ref,
                  scrpad, scr2):
    # Shapes (all static):
    #   x1p_ref : (TB*L, K*Cin)  bf16  pre-packed conv1 im2col, rows ordered
    #                                  [even positions (TB*L2 rows), odd positions]
    #   xs_ref  : (TB, sd)       f32   structural features
    #   w1p_ref : (K*Cin, C1)    bf16  conv1 weights, tap-major rows
    #   w2p_ref : (K*C1, C2)     bf16  conv2 weights, tap-major rows
    #   b1/b2/bl: (1,C1)/(1,C2)/(1,nc) f32
    #   wlg_ref : (C2, nc) f32   classifier weights on GAP features
    #   wls_ref : (sd, nc) f32   classifier weights on structural features
    #   logits_ref : (TB, nc) f32
    #   fmap_ref   : (TB*L4, C2) f32  (reshaped/transposed back to (B,C2,L4) outside)
    #   scrpad : (TB, L2+2*PAD, C1) f32 scratch -- zero-padded conv2 input
    #   scr2   : (TB*L2, C2) f32 scratch -- conv2 ReLU output (pooled via strided reads)
    TBL, _ = x1p_ref.shape
    C1 = w1p_ref.shape[1]
    C2 = w2p_ref.shape[1]
    K = w2p_ref.shape[0] // C1
    TB = xs_ref.shape[0]
    L = TBL // TB
    L2 = L // 2
    L4 = L2 // 2
    PAD = (K - 1) // 2

    # ---- conv1: one batched im2col matmul (bf16 operands, f32 accumulate) --------
    y1 = jnp.dot(x1p_ref[...], w1p_ref[...], preferred_element_type=jnp.float32)
    y1 = jnp.maximum(y1 + b1_ref[...], 0.0)                    # (TB*L, C1) f32

    # MaxPool1d(2): even-position rows are the first TB*L2 rows, odd positions the
    # last TB*L2 rows (wrapper ordering), so pooling is a max of contiguous halves.
    half = TB * L2
    pooled1 = jnp.maximum(y1[:half, :], y1[half:, :])          # (TB*L2, C1), (bi, j)

    # Scatter pooled1 into the per-batch zero-padded conv2 input buffer.
    for bi in range(TB):
        scrpad[bi, 0:PAD, :] = jnp.zeros((PAD, C1), jnp.float32)
        scrpad[bi, PAD:PAD + L2, :] = pooled1[bi * L2:(bi + 1) * L2, :]
        scrpad[bi, PAD + L2:L2 + 2 * PAD, :] = jnp.zeros((PAD, C1), jnp.float32)

    # ---- conv2: one batched im2col matmul over the whole tile ---------------------
    x2 = jnp.concatenate(
        [jnp.concatenate([scrpad[bi, k:k + L2, :] for k in range(K)], axis=-1)
         for bi in range(TB)], axis=0)                          # (TB*L2, K*C1) f32
    y2 = jnp.dot(x2.astype(jnp.bfloat16), w2p_ref[...],
                 preferred_element_type=jnp.float32)            # (TB*L2, C2) f32
    scr2[...] = jnp.maximum(y2 + b2_ref[...], 0.0)

    # MaxPool1d(2) via flattened even/odd stride-2 ref reads (L2 even keeps every
    # batch element's rows parity-aligned in the flat buffer).
    pooled2 = jnp.maximum(scr2[pl.ds(0, TB * L4, 2), :],
                          scr2[pl.ds(1, TB * L4, 2), :])        # (TB*L4, C2), (bi, j)
    fmap_ref[...] = pooled2

    # ---- GAP + classifier, hoisted to one matmul / one store per grid step --------
    gap = jnp.concatenate(
        [jnp.mean(pooled2[bi * L4:(bi + 1) * L4, :], axis=0, keepdims=True)
         for bi in range(TB)], axis=0)                          # (TB, C2)
    # Dropout(0.5) is identity at inference (eval mode).
    logits_ref[...] = (jnp.dot(gap, wlg_ref[...], preferred_element_type=jnp.float32)
                       + jnp.dot(xs_ref[...], wls_ref[...],
                                 preferred_element_type=jnp.float32)
                       + bl_ref[...])


def camcnn_forward(x_seq, x_struct, params, *, max_tb=4):
    """x_seq: (B, 20, L) f32, x_struct: (B, sd) f32 -> (logits (B, nc), fmap (B, 128, L//4))."""
    w1, b1, w2, b2, wl, bl = params
    B, Cin, L = x_seq.shape
    C1, _, K = w1.shape
    C2 = w2.shape[0]
    sd = x_struct.shape[1]
    nc = wl.shape[0]
    PAD = (K - 1) // 2
    L2, L4 = L // 2, L // 4
    f32 = jnp.float32

    # Batch tile: amortize per-grid-step overhead, but keep >= 2 grid steps whenever
    # the batch allows it so v7x's two TensorCores both get work on the parallel axis.
    TB = min(max_tb, B)
    if B >= 2:
        TB = max(1, min(TB, B // 2))
    Bp = ((B + TB - 1) // TB) * TB
    nG = Bp // TB

    x_seq = x_seq.astype(f32)
    xs2 = x_struct.astype(f32)
    if Bp != B:
        x_seq = jnp.pad(x_seq, ((0, Bp - B), (0, 0), (0, 0)))
        xs2 = jnp.pad(xs2, ((0, Bp - B), (0, 0)))

    # Wrapper-side conv1 im2col (tap-major lanes), even-positions-first reordering,
    # grouped per batch tile as [parity, batch-in-tile, position]; bf16 for the MXU.
    xpad_lc = jnp.transpose(jnp.pad(x_seq, ((0, 0), (0, 0), (PAD, PAD))),
                            (0, 2, 1)).astype(jnp.bfloat16)              # (Bp, Lp, Cin)
    x1w = jnp.concatenate([xpad_lc[:, k:k + L, :] for k in range(K)], axis=-1)  # (Bp,L,K*Cin)
    x1w = jnp.concatenate([x1w[:, 0::2, :], x1w[:, 1::2, :]], axis=1)     # even-first
    x1p = (x1w.reshape(nG, TB, 2, L2, K * Cin)
              .transpose(0, 2, 1, 3, 4)
              .reshape(nG, TB * L, K * Cin))                              # (nG, TB*L, K*Cin)

    xs3 = xs2.reshape(nG, TB, sd)

    w1p = jnp.transpose(w1, (2, 1, 0)).reshape(K * Cin, C1).astype(jnp.bfloat16)
    w2p = jnp.transpose(w2, (2, 1, 0)).reshape(K * C1, C2).astype(jnp.bfloat16)
    b1r = b1.reshape(1, C1).astype(f32)
    b2r = b2.reshape(1, C2).astype(f32)
    wlg = wl[:, :C2].T.astype(f32)                    # (C2, nc)
    wls = wl[:, C2:].T.astype(f32)                    # (sd, nc)
    blr = bl.reshape(1, nc).astype(f32)

    flops = (2 * Bp * L * (K * Cin) * C1
             + 2 * Bp * L2 * (K * C1) * C2
             + 2 * Bp * (C2 + sd) * nc)
    bytes_accessed = (x1p.size * 2 + xs3.size * 4 + w1p.size * 2 + w2p.size * 2
                      + (b1r.size + b2r.size + wlg.size + wls.size + blr.size) * 4
                      + Bp * nc * 4 + Bp * L4 * C2 * 4)

    grid_spec = pltpu.PrefetchScalarGridSpec(
        num_scalar_prefetch=0,
        grid=(nG,),
        in_specs=[
            pl.BlockSpec((None, TB * L, K * Cin), lambda g: (g, 0, 0)),
            pl.BlockSpec((None, TB, sd), lambda g: (g, 0, 0)),
            pl.BlockSpec((K * Cin, C1), lambda g: (0, 0)),
            pl.BlockSpec((1, C1), lambda g: (0, 0)),
            pl.BlockSpec((K * C1, C2), lambda g: (0, 0)),
            pl.BlockSpec((1, C2), lambda g: (0, 0)),
            pl.BlockSpec((C2, nc), lambda g: (0, 0)),
            pl.BlockSpec((sd, nc), lambda g: (0, 0)),
            pl.BlockSpec((1, nc), lambda g: (0, 0)),
        ],
        out_specs=(
            pl.BlockSpec((None, TB, nc), lambda g: (g, 0, 0)),
            pl.BlockSpec((None, TB * L4, C2), lambda g: (g, 0, 0)),
        ),
        scratch_shapes=[
            pltpu.VMEM((TB, L2 + 2 * PAD, C1), f32),
            pltpu.VMEM((TB * L2, C2), f32),
        ],
    )

    logits3, fmap3 = pl.pallas_call(
        camcnn_kernel,
        out_shape=(jax.ShapeDtypeStruct((nG, TB, nc), f32),
                   jax.ShapeDtypeStruct((nG, TB * L4, C2), f32)),
        grid_spec=grid_spec,
        compiler_params=pltpu.CompilerParams(
            dimension_semantics=("parallel",),
            vmem_limit_bytes=64 * 1024 * 1024),
        cost_estimate=pl.CostEstimate(flops=flops, transcendentals=0,
                                      bytes_accessed=bytes_accessed),
    )(x1p, xs3, w1p, b1r, w2p, b2r, wlg, wls, blr)

    logits = logits3.reshape(Bp, nc)[:B]
    fmap = jnp.transpose(fmap3.reshape(Bp, L4, C2)[:B], (0, 2, 1))  # PyTorch (B, C2, L4)
    return logits, fmap


def reference_forward(x_seq, x_struct, params):
    """Pure-JAX f32 reference mirroring the PyTorch module (eval mode)."""
    w1, b1, w2, b2, wl, bl = params
    K = w1.shape[-1]
    PAD = (K - 1) // 2
    dn = ('NCH', 'OIH', 'NCH')

    y = lax.conv_general_dilated(x_seq, w1, (1,), [(PAD, PAD)], dimension_numbers=dn)
    y = jnp.maximum(y + b1[None, :, None], 0.0)
    B, C, Lc = y.shape
    y = jnp.max(y.reshape(B, C, Lc // 2, 2), axis=-1)

    y = lax.conv_general_dilated(y, w2, (1,), [(PAD, PAD)], dimension_numbers=dn)
    y = jnp.maximum(y + b2[None, :, None], 0.0)
    B, C, Lc = y.shape
    fmap = jnp.max(y.reshape(B, C, Lc // 2, 2), axis=-1)

    gap = fmap.mean(axis=2)
    combined = jnp.concatenate([gap, x_struct], axis=1)
    logits = combined @ wl.T + bl
    return logits, fmap


if __name__ == "__main__":
    # Small shapes consistent with the module: Conv1d expects 20 input channels.
    B, Cin, L = 2, 20, 16
    struct_dim, num_classes = 4, 2
    C1, C2, K = 64, 128, 15

    key = jax.random.PRNGKey(0)
    ks = jax.random.split(key, 8)
    x_seq = jax.random.normal(ks[0], (B, Cin, L), dtype=jnp.float32)
    x_struct = jax.random.normal(ks[1], (B, struct_dim), dtype=jnp.float32)

    # Deterministic parameter init (synthetic; not a checkpoint load).
    w1 = jax.random.normal(ks[2], (C1, Cin, K), dtype=jnp.float32) * 0.05
    b1 = jax.random.normal(ks[3], (C1,), dtype=jnp.float32) * 0.05
    w2 = jax.random.normal(ks[4], (C2, C1, K), dtype=jnp.float32) * 0.02
    b2 = jax.random.normal(ks[5], (C2,), dtype=jnp.float32) * 0.02
    wl = jax.random.normal(ks[6], (num_classes, C2 + struct_dim), dtype=jnp.float32) * 0.05
    bl = jax.random.normal(ks[7], (num_classes,), dtype=jnp.float32) * 0.05
    params = (w1, b1, w2, b2, wl, bl)

    logits, fmap = camcnn_forward(x_seq, x_struct, params)
    jax.block_until_ready((logits, fmap))

    ref_logits, ref_fmap = reference_forward(x_seq, x_struct, params)
    assert logits.shape == (B, num_classes) and fmap.shape == (B, C2, L // 4)
    # bf16 MXU operands -> tolerance loosened vs the f32 reference.
    assert jnp.allclose(logits, ref_logits, rtol=2e-2, atol=2e-2), "logits mismatch"
    assert jnp.allclose(fmap, ref_fmap, rtol=2e-2, atol=2e-2), "fmap mismatch"

    print("KERNEL_OK")
</pallas_src>

<mosaic_0001>
module attributes {stable_mosaic.version = 11 : i64} {
  func.func @camcnn_kernel(%arg0: i32, %arg1: memref<1x16x300xbf16, #tpu.memory_space<vmem>>, %arg2: memref<1x1x4xf32, #tpu.memory_space<vmem>>, %arg3: memref<300x64xbf16, #tpu.memory_space<vmem>>, %arg4: memref<1x64xf32, #tpu.memory_space<vmem>>, %arg5: memref<960x128xbf16, #tpu.memory_space<vmem>>, %arg6: memref<1x128xf32, #tpu.memory_space<vmem>>, %arg7: memref<128x2xf32, #tpu.memory_space<vmem>>, %arg8: memref<4x2xf32, #tpu.memory_space<vmem>>, %arg9: memref<1x2xf32, #tpu.memory_space<vmem>>, %arg10: memref<1x1x2xf32, #tpu.memory_space<vmem>>, %arg11: memref<1x4x128xf32, #tpu.memory_space<vmem>>, %arg12: memref<1x22x64xf32, #tpu.memory_space<vmem>>, %arg13: memref<8x128xf32, #tpu.memory_space<vmem>>) attributes {dimension_semantics = [#tpu.dimension_semantics<parallel>], iteration_bounds = array<i64: 2>, scalar_prefetch = 0 : i64, scratch_operands = 2 : i64, tpu.core_type = #tpu.core_type<tc>, window_params = [{transform_indices = @transform_0, window_bounds = array<i64: 1, 16, 300>}, {transform_indices = @transform_1, window_bounds = array<i64: 1, 1, 4>}, {pipeline_mode = #tpu.pipeline_mode<synchronous>, transform_indices = @transform_2, window_bounds = array<i64: 300, 64>}, {pipeline_mode = #tpu.pipeline_mode<synchronous>, transform_indices = @transform_3, window_bounds = array<i64: 1, 64>}, {pipeline_mode = #tpu.pipeline_mode<synchronous>, transform_indices = @transform_4, window_bounds = array<i64: 960, 128>}, {pipeline_mode = #tpu.pipeline_mode<synchronous>, transform_indices = @transform_5, window_bounds = array<i64: 1, 128>}, {pipeline_mode = #tpu.pipeline_mode<synchronous>, transform_indices = @transform_6, window_bounds = array<i64: 128, 2>}, {pipeline_mode = #tpu.pipeline_mode<synchronous>, transform_indices = @transform_7, window_bounds = array<i64: 4, 2>}, {pipeline_mode = #tpu.pipeline_mode<synchronous>, transform_indices = @transform_8, window_bounds = array<i64: 1, 2>}, {transform_indices = @transform_9, window_bounds = array<i64: 1, 1, 2>}, {transform_indices = @transform_10, window_bounds = array<i64: 1, 4, 128>}]} {
    %c0 = arith.constant 0 : index
    %c0_0 = arith.constant 0 : index
    %c0_1 = arith.constant 0 : index
    %0 = vector.load %arg1[%c0, %c0_0, %c0_1] : memref<1x16x300xbf16, #tpu.memory_space<vmem>>, vector<1x16x300xbf16>
    %1 = vector.shape_cast %0 : vector<1x16x300xbf16> to vector<16x300xbf16>
    %c0_2 = arith.constant 0 : index
    %c0_3 = arith.constant 0 : index
    %2 = vector.load %arg3[%c0_2, %c0_3] : memref<300x64xbf16, #tpu.memory_space<vmem>>, vector<300x64xbf16>
    %cst = arith.constant dense<0.000000e+00> : vector<16x64xf32>
    %3 = tpu.matmul %1, %2, %cst {dimension_numbers = #tpu.dot_dimension_numbers<[1], [0], [0], [1], [0, 0, 1, 1], [], []>} : vector<16x300xbf16>, vector<300x64xbf16>, vector<16x64xf32> -> vector<16x64xf32>
    %c0_4 = arith.constant 0 : index
    %c0_5 = arith.constant 0 : index
    %4 = vector.load %arg4[%c0_4, %c0_5] : memref<1x64xf32, #tpu.memory_space<vmem>>, vector<1x64xf32>
    %5 = vector.broadcast %4 : vector<1x64xf32> to vector<16x64xf32>
    %6 = arith.addf %3, %5 : vector<16x64xf32>
    %cst_6 = arith.constant 0.000000e+00 : f32
    %7 = vector.broadcast %cst_6 : f32 to vector<16x64xf32>
    %8 = arith.maximumf %6, %7 : vector<16x64xf32>
    %9 = vector.extract_strided_slice %8 {offsets = [0, 0], sizes = [8, 64], strides = [1, 1]} : vector<16x64xf32> to vector<8x64xf32>
    %10 = vector.extract_strided_slice %8 {offsets = [8, 0], sizes = [8, 64], strides = [1, 1]} : vector<16x64xf32> to vector<8x64xf32>
    %11 = arith.maximumf %9, %10 : vector<8x64xf32>
    %cst_7 = arith.constant 0.000000e+00 : f32
    %12 = vector.broadcast %cst_7 : f32 to vector<7x64xf32>
    %c0_8 = arith.constant 0 : index
    %c0_9 = arith.constant 0 : index
    %c0_10 = arith.constant 0 : index
    %13 = vector.load %arg12[%c0_8, %c0_9, %c0_10] : memref<1x22x64xf32, #tpu.memory_space<vmem>>, vector<1x7x64xf32>
    %14 = vector.shape_cast %13 : vector<1x7x64xf32> to vector<7x64xf32>
    %15 = vector.shape_cast %12 : vector<7x64xf32> to vector<1x7x64xf32>
    tpu.vector_store %arg12[%c0_8, %c0_9, %c0_10], %15 {strides = array<i32>} : memref<1x22x64xf32, #tpu.memory_space<vmem>>, vector<1x7x64xf32>,
    %c0_11 = arith.constant 0 : index
    %c7 = arith.constant 7 : index
    %c0_12 = arith.constant 0 : index
    %16 = vector.load %arg12[%c0_11, %c7, %c0_12] : memref<1x22x64xf32, #tpu.memory_space<vmem>>, vector<1x8x64xf32>
    %17 = vector.shape_cast %16 : vector<1x8x64xf32> to vector<8x64xf32>
    %18 = vector.shape_cast %11 : vector<8x64xf32> to vector<1x8x64xf32>
    tpu.vector_store %arg12[%c0_11, %c7, %c0_12], %18 {strides = array<i32>} : memref<1x22x64xf32, #tpu.memory_space<vmem>>, vector<1x8x64xf32>,
    %cst_13 = arith.constant 0.000000e+00 : f32
    %19 = vector.broadcast %cst_13 : f32 to vector<7x64xf32>
    %c0_14 = arith.constant 0 : index
    %c15 = arith.constant 15 : index
    %c0_15 = arith.constant 0 : index
    %20 = vector.load %arg12[%c0_14, %c15, %c0_15] : memref<1x22x64xf32, #tpu.memory_space<vmem>>, vector<1x7x64xf32>
    %21 = vector.shape_cast %20 : vector<1x7x64xf32> to vector<7x64xf32>
    %22 = vector.shape_cast %19 : vector<7x64xf32> to vector<1x7x64xf32>
    tpu.vector_store %arg12[%c0_14, %c15, %c0_15], %22 {strides = array<i32>} : memref<1x22x64xf32, #tpu.memory_space<vmem>>, vector<1x7x64xf32>,
    %c0_16 = arith.constant 0 : index
    %c0_17 = arith.constant 0 : index
    %c0_18 = arith.constant 0 : index
    %23 = vector.load %arg12[%c0_16, %c0_17, %c0_18] : memref<1x22x64xf32, #tpu.memory_space<vmem>>, vector<1x8x64xf32>
    %24 = vector.shape_cast %23 : vector<1x8x64xf32> to vector<8x64xf32>
    %c0_19 = arith.constant 0 : index
    %c1 = arith.constant 1 : index
    %c0_20 = arith.constant 0 : index
    %25 = vector.load %arg12[%c0_19, %c1, %c0_20] : memref<1x22x64xf32, #tpu.memory_space<vmem>>, vector<1x8x64xf32>
    %26 = vector.shape_cast %25 : vector<1x8x64xf32> to vector<8x64xf32>
    %c0_21 = arith.constant 0 : index
    %c2 = arith.constant 2 : index
    %c0_22 = arith.constant 0 : index
    %27 = vector.load %arg12[%c0_21, %c2, %c0_22] : memref<1x22x64xf32, #tpu.memory_space<vmem>>, vector<1x8x64xf32>
    %28 = vector.shape_cast %27 : vector<1x8x64xf32> to vector<8x64xf32>
    %c0_23 = arith.constant 0 : index
    %c3 = arith.constant 3 : index
    %c0_24 = arith.constant 0 : index
    %29 = vector.load %arg12[%c0_23, %c3, %c0_24] : memref<1x22x64xf32, #tpu.memory_space<vmem>>, vector<1x8x64xf32>
    %30 = vector.shape_cast %29 : vector<1x8x64xf32> to vector<8x64xf32>
    %c0_25 = arith.constant 0 : index
    %c4 = arith.constant 4 : index
    %c0_26 = arith.constant 0 : index
    %31 = vector.load %arg12[%c0_25, %c4, %c0_26] : memref<1x22x64xf32, #tpu.memory_space<vmem>>, vector<1x8x64xf32>
    %32 = vector.shape_cast %31 : vector<1x8x64xf32> to vector<8x64xf32>
    %c0_27 = arith.constant 0 : index
    %c5 = arith.constant 5 : index
    %c0_28 = arith.constant 0 : index
    %33 = vector.load %arg12[%c0_27, %c5, %c0_28] : memref<1x22x64xf32, #tpu.memory_space<vmem>>, vector<1x8x64xf32>
    %34 = vector.shape_cast %33 : vector<1x8x64xf32> to vector<8x64xf32>
    %c0_29 = arith.constant 0 : index
    %c6 = arith.constant 6 : index
    %c0_30 = arith.constant 0 : index
    %35 = vector.load %arg12[%c0_29, %c6, %c0_30] : memref<1x22x64xf32, #tpu.memory_space<vmem>>, vector<1x8x64xf32>
    %36 = vector.shape_cast %35 : vector<1x8x64xf32> to vector<8x64xf32>
    %c0_31 = arith.constant 0 : index
    %c7_32 = arith.constant 7 : index
    %c0_33 = arith.constant 0 : index
    %37 = vector.load %arg12[%c0_31, %c7_32, %c0_33] : memref<1x22x64xf32, #tpu.memory_space<vmem>>, vector<1x8x64xf32>
    %38 = vector.shape_cast %37 : vector<1x8x64xf32> to vector<8x64xf32>
    %c0_34 = arith.constant 0 : index
    %c8 = arith.constant 8 : index
    %c0_35 = arith.constant 0 : index
    %39 = vector.load %arg12[%c0_34, %c8, %c0_35] : memref<1x22x64xf32, #tpu.memory_space<vmem>>, vector<1x8x64xf32>
    %40 = vector.shape_cast %39 : vector<1x8x64xf32> to vector<8x64xf32>
    %c0_36 = arith.constant 0 : index
    %c9 = arith.constant 9 : index
    %c0_37 = arith.constant 0 : index
    %41 = vector.load %arg12[%c0_36, %c9, %c0_37] : memref<1x22x64xf32, #tpu.memory_space<vmem>>, vector<1x8x64xf32>
    %42 = vector.shape_cast %41 : vector<1x8x64xf32> to vector<8x64xf32>
    %c0_38 = arith.constant 0 : index
    %c10 = arith.constant 10 : index
    %c0_39 = arith.constant 0 : index
    %43 = vector.load %arg12[%c0_38, %c10, %c0_39] : memref<1x22x64xf32, #tpu.memory_space<vmem>>, vector<1x8x64xf32>
    %44 = vector.shape_cast %43 : vector<1x8x64xf32> to vector<8x64xf32>
    %c0_40 = arith.constant 0 : index
    %c11 = arith.constant 11 : index
    %c0_41 = arith.constant 0 : index
    %45 = vector.load %arg12[%c0_40, %c11, %c0_41] : memref<1x22x64xf32, #tpu.memory_space<vmem>>, vector<1x8x64xf32>
    %46 = vector.shape_cast %45 : vector<1x8x64xf32> to vector<8x64xf32>
    %c0_42 = arith.constant 0 : index
    %c12 = arith.constant 12 : index
    %c0_43 = arith.constant 0 : index
    %47 = vector.load %arg12[%c0_42, %c12, %c0_43] : memref<1x22x64xf32, #tpu.memory_space<vmem>>, vector<1x8x64xf32>
    %48 = vector.shape_cast %47 : vector<1x8x64xf32> to vector<8x64xf32>
    %c0_44 = arith.constant 0 : index
    %c13 = arith.constant 13 : index
    %c0_45 = arith.constant 0 : index
    %49 = vector.load %arg12[%c0_44, %c13, %c0_45] : memref<1x22x64xf32, #tpu.memory_space<vmem>>, vector<1x8x64xf32>
    %50 = vector.shape_cast %49 : vector<1x8x64xf32> to vector<8x64xf32>
    %c0_46 = arith.constant 0 : index
    %c14 = arith.constant 14 : index
    %c0_47 = arith.constant 0 : index
    %51 = vector.load %arg12[%c0_46, %c14, %c0_47] : memref<1x22x64xf32, #tpu.memory_space<vmem>>, vector<1x8x64xf32>
    %52 = vector.shape_cast %51 : vector<1x8x64xf32> to vector<8x64xf32>
    %53 = tpu.concatenate %24, %26, %28, %30, %32, %34, %36, %38, %40, %42, %44, %46, %48, %50, %52 in 1 : vector<8x64xf32>, vector<8x64xf32>, vector<8x64xf32>, vector<8x64xf32>, vector<8x64xf32>, vector<8x64xf32>, vector<8x64xf32>, vector<8x64xf32>, vector<8x64xf32>, vector<8x64xf32>, vector<8x64xf32>, vector<8x64xf32>, vector<8x64xf32>, vector<8x64xf32>, vector<8x64xf32> -> vector<8x960xf32>
    %54 = arith.truncf %53 : vector<8x960xf32> to vector<8x960xbf16>
    %c0_48 = arith.constant 0 : index
    %c0_49 = arith.constant 0 : index
    %55 = vector.load %arg5[%c0_48, %c0_49] : memref<960x128xbf16, #tpu.memory_space<vmem>>, vector<960x128xbf16>
    %cst_50 = arith.constant dense<0.000000e+00> : vector<8x128xf32>
    %56 = tpu.matmul %54, %55, %cst_50 {dimension_numbers = #tpu.dot_dimension_numbers<[1], [0], [0], [1], [0, 0, 1, 1], [], []>} : vector<8x960xbf16>, vector<960x128xbf16>, vector<8x128xf32> -> vector<8x128xf32>
    %c0_51 = arith.constant 0 : index
    %c0_52 = arith.constant 0 : index
    %57 = vector.load %arg6[%c0_51, %c0_52] : memref<1x128xf32, #tpu.memory_space<vmem>>, vector<1x128xf32>
    %58 = vector.broadcast %57 : vector<1x128xf32> to vector<8x128xf32>
    %59 = arith.addf %56, %58 : vector<8x128xf32>
    %cst_53 = arith.constant 0.000000e+00 : f32
    %60 = vector.broadcast %cst_53 : f32 to vector<8x128xf32>
    %61 = arith.maximumf %59, %60 : vector<8x128xf32>
    %c0_54 = arith.constant 0 : index
    %c0_55 = arith.constant 0 : index
    %62 = vector.load %arg13[%c0_54, %c0_55] : memref<8x128xf32, #tpu.memory_space<vmem>>, vector<8x128xf32>
    tpu.vector_store %arg13[%c0_54, %c0_55], %61 {strides = array<i32>} : memref<8x128xf32, #tpu.memory_space<vmem>>, vector<8x128xf32>,
    %c0_56 = arith.constant 0 : index
    %c0_57 = arith.constant 0 : index
    %63 = tpu.strided_load %arg13[%c0_56, %c0_57] {strides = array<i32: 2, 1>} : memref<8x128xf32, #tpu.memory_space<vmem>>, vector<4x128xf32>
    %c1_58 = arith.constant 1 : index
    %c0_59 = arith.constant 0 : index
    %64 = tpu.strided_load %arg13[%c1_58, %c0_59] {strides = array<i32: 2, 1>} : memref<8x128xf32, #tpu.memory_space<vmem>>, vector<4x128xf32>
    %65 = arith.maximumf %63, %64 : vector<4x128xf32>
    %c0_60 = arith.constant 0 : index
    %c0_61 = arith.constant 0 : index
    %c0_62 = arith.constant 0 : index
    %66 = vector.load %arg11[%c0_60, %c0_61, %c0_62] : memref<1x4x128xf32, #tpu.memory_space<vmem>>, vector<1x4x128xf32>
    %67 = vector.shape_cast %66 : vector<1x4x128xf32> to vector<4x128xf32>
    %68 = vector.shape_cast %65 : vector<4x128xf32> to vector<1x4x128xf32>
    tpu.vector_store %arg11[%c0_60, %c0_61, %c0_62], %68 {strides = array<i32>} : memref<1x4x128xf32, #tpu.memory_space<vmem>>, vector<1x4x128xf32>,
    %cst_63 = arith.constant dense<0.000000e+00> : vector<128xf32>
    %69 = vector.multi_reduction <add>, %65, %cst_63 [0] : vector<4x128xf32> to vector<128xf32>
    %70 = vector.shape_cast %69 : vector<128xf32> to vector<1x128xf32>
    %cst_64 = arith.constant 4.000000e+00 : f32
    %71 = vector.broadcast %cst_64 : f32 to vector<1x128xf32>
    %72 = arith.divf %70, %71 : vector<1x128xf32>
    %c0_65 = arith.constant 0 : index
    %c0_66 = arith.constant 0 : index
    %73 = vector.load %arg7[%c0_65, %c0_66] : memref<128x2xf32, #tpu.memory_space<vmem>>, vector<128x2xf32>
    %cst_67 = arith.constant dense<0.000000e+00> : vector<1x2xf32>
    %74 = tpu.matmul %72, %73, %cst_67 {dimension_numbers = #tpu.dot_dimension_numbers<[1], [0], [0], [1], [0, 0, 1, 1], [], []>} : vector<1x128xf32>, vector<128x2xf32>, vector<1x2xf32> -> vector<1x2xf32>
    %c0_68 = arith.constant 0 : index
    %c0_69 = arith.constant 0 : index
    %c0_70 = arith.constant 0 : index
    %75 = vector.load %arg2[%c0_68, %c0_69, %c0_70] : memref<1x1x4xf32, #tpu.memory_space<vmem>>, vector<1x1x4xf32>
    %76 = vector.shape_cast %75 : vector<1x1x4xf32> to vector<1x4xf32>
    %c0_71 = arith.constant 0 : index
    %c0_72 = arith.constant 0 : index
    %77 = vector.load %arg8[%c0_71, %c0_72] : memref<4x2xf32, #tpu.memory_space<vmem>>, vector<4x2xf32>
    %cst_73 = arith.constant dense<0.000000e+00> : vector<1x2xf32>
    %78 = tpu.matmul %76, %77, %cst_73 {dimension_numbers = #tpu.dot_dimension_numbers<[1], [0], [0], [1], [0, 0, 1, 1], [], []>} : vector<1x4xf32>, vector<4x2xf32>, vector<1x2xf32> -> vector<1x2xf32>
    %79 = arith.addf %74, %78 : vector<1x2xf32>
    %c0_74 = arith.constant 0 : index
    %c0_75 = arith.constant 0 : index
    %80 = vector.load %arg9[%c0_74, %c0_75] : memref<1x2xf32, #tpu.memory_space<vmem>>, vector<1x2xf32>
    %81 = arith.addf %79, %80 : vector<1x2xf32>
    %c0_76 = arith.constant 0 : index
    %c0_77 = arith.constant 0 : index
    %c0_78 = arith.constant 0 : index
    %82 = vector.load %arg10[%c0_76, %c0_77, %c0_78] : memref<1x1x2xf32, #tpu.memory_space<vmem>>, vector<1x1x2xf32>
    %83 = vector.shape_cast %82 : vector<1x1x2xf32> to vector<1x2xf32>
    %84 = vector.shape_cast %81 : vector<1x2xf32> to vector<1x1x2xf32>
    tpu.vector_store %arg10[%c0_76, %c0_77, %c0_78], %84 {strides = array<i32>} : memref<1x1x2xf32, #tpu.memory_space<vmem>>, vector<1x1x2xf32>,
    return
  }
  func.func @transform_0(%arg0: i32) -> (i32, i32, i32) {
    %c0_i32 = arith.constant 0 : i32
    %c0_i32_0 = arith.constant 0 : i32
    %c0_i32_1 = arith.constant 0 : i32
    return %arg0, %c0_i32, %c0_i32_0 : i32, i32, i32
  }
  func.func @transform_1(%arg0: i32) -> (i32, i32, i32) {
    %c0_i32 = arith.constant 0 : i32
    %c0_i32_0 = arith.constant 0 : i32
    %c0_i32_1 = arith.constant 0 : i32
    return %arg0, %c0_i32, %c0_i32_0 : i32, i32, i32
  }
  func.func @transform_2(%arg0: i32) -> (i32, i32) {
    %c0_i32 = arith.constant 0 : i32
    %c0_i32_0 = arith.constant 0 : i32
    %c0_i32_1 = arith.constant 0 : i32
    return %c0_i32, %c0_i32_0 : i32, i32
  }
  func.func @transform_3(%arg0: i32) -> (i32, i32) {
    %c0_i32 = arith.constant 0 : i32
    %c0_i32_0 = arith.constant 0 : i32
    %c0_i32_1 = arith.constant 0 : i32
    return %c0_i32, %c0_i32_0 : i32, i32
  }
  func.func @transform_4(%arg0: i32) -> (i32, i32) {
    %c0_i32 = arith.constant 0 : i32
    %c0_i32_0 = arith.constant 0 : i32
    %c0_i32_1 = arith.constant 0 : i32
    return %c0_i32, %c0_i32_0 : i32, i32
  }
  func.func @transform_5(%arg0: i32) -> (i32, i32) {
    %c0_i32 = arith.constant 0 : i32
    %c0_i32_0 = arith.constant 0 : i32
    %c0_i32_1 = arith.constant 0 : i32
    return %c0_i32, %c0_i32_0 : i32, i32
  }
  func.func @transform_6(%arg0: i32) -> (i32, i32) {
    %c0_i32 = arith.constant 0 : i32
    %c0_i32_0 = arith.constant 0 : i32
    %c0_i32_1 = arith.constant 0 : i32
    return %c0_i32, %c0_i32_0 : i32, i32
  }
  func.func @transform_7(%arg0: i32) -> (i32, i32) {
    %c0_i32 = arith.constant 0 : i32
    %c0_i32_0 = arith.constant 0 : i32
    %c0_i32_1 = arith.constant 0 : i32
    return %c0_i32, %c0_i32_0 : i32, i32
  }
  func.func @transform_8(%arg0: i32) -> (i32, i32) {
    %c0_i32 = arith.constant 0 : i32
    %c0_i32_0 = arith.constant 0 : i32
    %c0_i32_1 = arith.constant 0 : i32
    return %c0_i32, %c0_i32_0 : i32, i32
  }
  func.func @transform_9(%arg0: i32) -> (i32, i32, i32) {
    %c0_i32 = arith.constant 0 : i32
    %c0_i32_0 = arith.constant 0 : i32
    %c0_i32_1 = arith.constant 0 : i32
    return %arg0, %c0_i32, %c0_i32_0 : i32, i32, i32
  }
  func.func @transform_10(%arg0: i32) -> (i32, i32, i32) {
    %c0_i32 = arith.constant 0 : i32
    %c0_i32_0 = arith.constant 0 : i32
    %c0_i32_1 = arith.constant 0 : i32
    return %arg0, %c0_i32, %c0_i32_0 : i32, i32, i32
  }
}

</mosaic_0001>

<llo_original>
// kernel: tpu_custom_call.1
$region0: #{tpu_custom_call.1}
  #allocation0 [shape = 'u32[]', space=smem, size = 0x4, offset = 0x4, fixed_abs, tag = 'smem constant byte address 0x4 - core index']
  #allocation1 [shape = 'u32[144,128]{1,0:T(1,128)}', space=vmem, size = 0x12000, scoped, tag = 'internal scratch']
  #allocation2 [shape = 'f32[1,22,64]{2,1,0:T(8,128)}', space=vmem, size = 0x3000, scoped, tag = 'scratch operand']
  #allocation3 [shape = 'f32[8,128]{1,0:T(8,128)}', space=vmem, size = 0x1000, scoped, tag = 'scratch operand']
  %s0 = inlined_call_operand.hbm [shape: bf16[2,16,300], index: 0, kind: input, shape index: {}]
  %s1 = inlined_call_operand.hbm [shape: f32[2,1,4], index: 1, kind: input, shape index: {}]
  %s2 = inlined_call_operand.hbm [shape: bf16[300,64], index: 2, kind: input, shape index: {}]
  %s3 = inlined_call_operand.hbm [shape: f32[1,64], index: 3, kind: input, shape index: {}]
  %s4 = inlined_call_operand.hbm [shape: bf16[960,128], index: 4, kind: input, shape index: {}]
  %s5 = inlined_call_operand.hbm [shape: f32[1,128], index: 5, kind: input, shape index: {}]
  %s6 = inlined_call_operand.hbm [shape: f32[128,2], index: 6, kind: input, shape index: {}]
  %s7 = inlined_call_operand.hbm [shape: f32[4,2], index: 7, kind: input, shape index: {}]
  %s8 = inlined_call_operand.hbm [shape: f32[1,2], index: 8, kind: input, shape index: {}]
  %s9 = inlined_call_operand.hbm [shape: f32[2,1,2], index: 9, kind: output, shape index: {0}]
  %s10 = inlined_call_operand.hbm [shape: f32[2,4,128], index: 10, kind: output, shape index: {1}]
  %11 = xla_tuple %s9, %s10
  %s12 = sld [smem:[#allocation0]]
  $region113: #{tpu_custom_call.1} parent=0
    _
  %s14 = ssub.s32 1, %s12
  %s15 = scalar_select 0, %s14, %s12
  $region1: #{tpu_custom_call.1} parent=0
    #allocation4 [shape = 'u8[24576]{0}', space=vmem, size = 0x6000, scoped, tag = 'input window, operand 0']
    #allocation5 [shape = 's32[2]{0}', space=sflag, size = 0x8, scoped, tag = 'scoped memory for tpu_custom_call.1']
    #allocation6 [shape = 's32[2]{0}', space=sflag, size = 0x8, scoped, tag = 'scoped memory for tpu_custom_call.1']
    #allocation7 [shape = 'u8[1024]{0}', space=vmem, size = 0x400, scoped, tag = 'input window, operand 1']
    #allocation8 [shape = 's32[2]{0}', space=sflag, size = 0x8, scoped, tag = 'scoped memory for tpu_custom_call.1']
    #allocation9 [shape = 'u8[77824]{0}', space=vmem, size = 0x13000, scoped, tag = 'input window, operand 2, single buffered']
    #allocation10 [shape = 'u8[512]{0}', space=vmem, size = 0x400, scoped, tag = 'input window, operand 3, single buffered']
    #allocation11 [shape = 's32[1]{0}', space=sflag, size = 0x4, scoped, tag = 'scoped memory for tpu_custom_call.1']
    #allocation12 [shape = 'u8[245760]{0}', space=vmem, size = 0x3c000, scoped, tag = 'input window, operand 4, single buffered']
    #allocation13 [shape = 'u8[512]{0}', space=vmem, size = 0x400, scoped, tag = 'input window, operand 5, single buffered']
    #allocation14 [shape = 's32[1]{0}', space=sflag, size = 0x4, scoped, tag = 'scoped memory for tpu_custom_call.1']
    #allocation15 [shape = 'u8[65536]{0}', space=vmem, size = 0x10000, scoped, tag = 'input window, operand 6, single buffered']
    #allocation16 [shape = 'u8[2048]{0}', space=vmem, size = 0x800, scoped, tag = 'input window, operand 7, single buffered']
    #allocation17 [shape = 's32[1]{0}', space=sflag, size = 0x4, scoped, tag = 'scoped memory for tpu_custom_call.1']
    #allocation18 [shape = 'u8[512]{0}', space=vmem, size = 0x400, scoped, tag = 'input window, operand 8, single buffered']
    #allocation19 [shape = 'u8[1024]{0}', space=vmem, size = 0x400, scoped, tag = 'output window, operand 0']
    #allocation20 [shape = 'u8[4096]{0}', space=vmem, size = 0x1000, scoped, tag = 'output window, operand 1']
    #allocation21 [shape = 's32[2]{0}', space=sflag, size = 0x8, scoped, tag = 'scoped memory for tpu_custom_call.1']
    %16 = vsyncpa [#allocation5], 0
    %s17 = scalar_lea.sflag [#allocation5], 1
    %18 = vsyncpa %s17, 0
    %19 = vsyncpa [#allocation8], 0
    %s20 = scalar_lea.sflag [#allocation8], 1
    %21 = vsyncpa %s20, 0
    %22 = vsyncpa [#allocation11], 0
    %23 = vsyncpa [#allocation14], 0
    %24 = vsyncpa [#allocation17], 0
    %25 = vsyncpa [#allocation6], 0
    %s26 = scalar_lea.sflag [#allocation6], 1
    %27 = vsyncpa %s26, 0
    %28 = vsyncpa [#allocation21], 0
    %s29 = scalar_lea.sflag [#allocation21], 1
    %30 = vsyncpa %s29, 0
    loop: start=0, step=1, limit=4
    $region2: #{tpu_custom_call.1} parent=1 // loop_pre_header
      _
    $region3: #{tpu_custom_call.1} parent=1 // loop_header
      %s32 = sphi 0, %s36
      %p33 = scmp.ge.s32.totalorder %s32, 4
      %s42 = sphi 0, %s44
      %s45 = sphi 0, %s42
      %s46 = sphi 0, %s45
      %s62 = sphi 0, %s46
      %s68 = sphi 0, %s70
      %s71 = sphi 0, %s68
      %s72 = sphi 0, %s71
      %s88 = sphi 0, %s72
      %s92 = sphi 0, %s92
      %s94 = sphi 0, %s92
      %s95 = sphi 0, %s94
      %s109 = sphi 0, %s95
      %s113 = sphi 0, %s113
      %s115 = sphi 0, %s113
      %s116 = sphi 0, %s115
      %s130 = sphi 0, %s116
      %s134 = sphi 0, %s134
      %s136 = sphi 0, %s134
      %s137 = sphi 0, %s136
      %s151 = sphi 0, %s137
      %s155 = sphi 0, %s155
      %s157 = sphi 0, %s155
      %s158 = sphi 0, %s157
      %s172 = sphi 0, %s158
      %s176 = sphi 0, %s176
      %s178 = sphi 0, %s176
      %s179 = sphi 0, %s178
      %s193 = sphi 0, %s179
      %s197 = sphi 0, %s197
      %s199 = sphi 0, %s197
      %s200 = sphi 0, %s199
      %s214 = sphi 0, %s200
      %s218 = sphi 0, %s218
      %s220 = sphi 0, %s218
      %s221 = sphi 0, %s220
      %s235 = sphi 0, %s221
      %s241 = sphi 0, %s243
      %s244 = sphi 0, %s241
      %s245 = sphi 0, %s244
      %s261 = sphi 0, %s245
      %s267 = sphi 0, %s269
      %s270 = sphi 0, %s267
      %s271 = sphi 0, %s270
      %s287 = sphi 0, %s271
    $region4: #{tpu_custom_call.1} parent=1 // loop_header_branch
      %35 = sbr.rel (%p33) target = $region8
    $region5: #{tpu_custom_call.1} parent=1 // loop_body
      %s37 = ssub.s32 %s32, 1
      %s38 = ssub.s32 %s32, 2
      %s39 = sadd.s32 %s32, 1
      %s40 = ssub.s32 %s32, %s39
      %p41 = scmp.eq.s32.totalorder %s40, 0
      %s43 = sadd.s32 %s42, 1
      %s44 = scalar_select %p41, %s42, %s43
      %p47 = pneg %p41
      %p48 = scmp.eq.s32.totalorder %s32, 1
      %p49 = por %p47, %p48
      %p50 = scmp.ne.s32.totalorder %s42, %s45
      %p51 = scmp.eq.s32.totalorder %s32, 0
      %p52 = por %p50, %p51
      %p53 = scmp.ne.s32.totalorder %s42, %s45
      %p54 = scmp.eq.s32.totalorder %s37, 1
      %p55 = por %p53, %p54
      %p56 = scmp.ne.s32.totalorder %s45, %s46
      %p57 = scmp.eq.s32.totalorder %s37, 0
      %p58 = por %p56, %p57
      %p59 = scmp.ne.s32.totalorder %s45, %s46
      %p60 = scmp.eq.s32.totalorder %s38, 1
      %p61 = por %p59, %p60
      %p63 = scmp.ne.s32.totalorder %s46, %s62
      %p64 = scmp.eq.s32.totalorder %s38, 0
      %p65 = por %p63, %p64
      %s66 = ssub.s32 %s32, %s39
      %p67 = scmp.eq.s32.totalorder %s66, 0
      %s69 = sadd.s32 %s68, 1
      %s70 = scalar_select %p67, %s68, %s69
      %p73 = pneg %p67
      %p74 = scmp.eq.s32.totalorder %s32, 1
      %p75 = por %p73, %p74
      %p76 = scmp.ne.s32.totalorder %s68, %s71
      %p77 = scmp.eq.s32.totalorder %s32, 0
      %p78 = por %p76, %p77
      %p79 = scmp.ne.s32.totalorder %s68, %s71
      %p80 = scmp.eq.s32.totalorder %s37, 1
      %p81 = por %p79, %p80
      %p82 = scmp.ne.s32.totalorder %s71, %s72
      %p83 = scmp.eq.s32.totalorder %s37, 0
      %p84 = por %p82, %p83
      %p85 = scmp.ne.s32.totalorder %s71, %s72
      %p86 = scmp.eq.s32.totalorder %s38, 1
      %p87 = por %p85, %p86
      %p89 = scmp.ne.s32.totalorder %s72, %s88
      %p90 = scmp.eq.s32.totalorder %s38, 0
      %p91 = por %p89, %p90
      %s93 = sadd.s32 %s92, 1
      %p96 = scmp.eq.s32.totalorder %s32, 1
      %p97 = scmp.ne.s32.totalorder %s92, %s94
      %p98 = scmp.eq.s32.totalorder %s32, 0
      %p99 = por %p97, %p98
      %p100 = scmp.ne.s32.totalorder %s92, %s94
      %p101 = scmp.eq.s32.totalorder %s37, 1
      %p102 = por %p100, %p101
      %p103 = scmp.ne.s32.totalorder %s94, %s95
      %p104 = scmp.eq.s32.totalorder %s37, 0
      %p105 = por %p103, %p104
      %p106 = scmp.ne.s32.totalorder %s94, %s95
      %p107 = scmp.eq.s32.totalorder %s38, 1
      %p108 = por %p106, %p107
      %p110 = scmp.ne.s32.totalorder %s95, %s109
      %p111 = scmp.eq.s32.totalorder %s38, 0
      %p112 = por %p110, %p111
      %s114 = sadd.s32 %s113, 1
      %p117 = scmp.eq.s32.totalorder %s32, 1
      %p118 = scmp.ne.s32.totalorder %s113, %s115
      %p119 = scmp.eq.s32.totalorder %s32, 0
      %p120 = por %p118, %p119
      %p121 = scmp.ne.s32.totalorder %s113, %s115
      %p122 = scmp.eq.s32.totalorder %s37, 1
      %p123 = por %p121, %p122
      %p124 = scmp.ne.s32.totalorder %s115, %s116
      %p125 = scmp.eq.s32.totalorder %s37, 0
      %p126 = por %p124, %p125
      %p127 = scmp.ne.s32.totalorder %s115, %s116
      %p128 = scmp.eq.s32.totalorder %s38, 1
      %p129 = por %p127, %p128
      %p131 = scmp.ne.s32.totalorder %s116, %s130
      %p132 = scmp.eq.s32.totalorder %s38, 0
      %p133 = por %p131, %p132
      %s135 = sadd.s32 %s134, 1
      %p138 = scmp.eq.s32.totalorder %s32, 1
      %p139 = scmp.ne.s32.totalorder %s134, %s136
      %p140 = scmp.eq.s32.totalorder %s32, 0
      %p141 = por %p139, %p140
      %p142 = scmp.ne.s32.totalorder %s134, %s136
      %p143 = scmp.eq.s32.totalorder %s37, 1
      %p144 = por %p142, %p143
      %p145 = scmp.ne.s32.totalorder %s136, %s137
      %p146 = scmp.eq.s32.totalorder %s37, 0
      %p147 = por %p145, %p146
      %p148 = scmp.ne.s32.totalorder %s136, %s137
      %p149 = scmp.eq.s32.totalorder %s38, 1
      %p150 = por %p148, %p149
      %p152 = scmp.ne.s32.totalorder %s137, %s151
      %p153 = scmp.eq.s32.totalorder %s38, 0
      %p154 = por %p152, %p153
      %s156 = sadd.s32 %s155, 1
      %p159 = scmp.eq.s32.totalorder %s32, 1
      %p160 = scmp.ne.s32.totalorder %s155, %s157
      %p161 = scmp.eq.s32.totalorder %s32, 0
      %p162 = por %p160, %p161
      %p163 = scmp.ne.s32.totalorder %s155, %s157
      %p164 = scmp.eq.s32.totalorder %s37, 1
      %p165 = por %p163, %p164
      %p166 = scmp.ne.s32.totalorder %s157, %s158
      %p167 = scmp.eq.s32.totalorder %s37, 0
      %p168 = por %p166, %p167
      %p169 = scmp.ne.s32.totalorder %s157, %s158
      %p170 = scmp.eq.s32.totalorder %s38, 1
      %p171 = por %p169, %p170
      %p173 = scmp.ne.s32.totalorder %s158, %s172
      %p174 = scmp.eq.s32.totalorder %s38, 0
      %p175 = por %p173, %p174
      %s177 = sadd.s32 %s176, 1
      %p180 = scmp.eq.s32.totalorder %s32, 1
      %p181 = scmp.ne.s32.totalorder %s176, %s178
      %p182 = scmp.eq.s32.totalorder %s32, 0
      %p183 = por %p181, %p182
      %p184 = scmp.ne.s32.totalorder %s176, %s178
      %p185 = scmp.eq.s32.totalorder %s37, 1
      %p186 = por %p184, %p185
      %p187 = scmp.ne.s32.totalorder %s178, %s179
      %p188 = scmp.eq.s32.totalorder %s37, 0
      %p189 = por %p187, %p188
      %p190 = scmp.ne.s32.totalorder %s178, %s179
      %p191 = scmp.eq.s32.totalorder %s38, 1
      %p192 = por %p190, %p191
      %p194 = scmp.ne.s32.totalorder %s179, %s193
      %p195 = scmp.eq.s32.totalorder %s38, 0
      %p196 = por %p194, %p195
      %s198 = sadd.s32 %s197, 1
      %p201 = scmp.eq.s32.totalorder %s32, 1
      %p202 = scmp.ne.s32.totalorder %s197, %s199
      %p203 = scmp.eq.s32.totalorder %s32, 0
      %p204 = por %p202, %p203
      %p205 = scmp.ne.s32.totalorder %s197, %s199
      %p206 = scmp.eq.s32.totalorder %s37, 1
      %p207 = por %p205, %p206
      %p208 = scmp.ne.s32.totalorder %s199, %s200
      %p209 = scmp.eq.s32.totalorder %s37, 0
      %p210 = por %p208, %p209
      %p211 = scmp.ne.s32.totalorder %s199, %s200
      %p212 = scmp.eq.s32.totalorder %s38, 1
      %p213 = por %p211, %p212
      %p215 = scmp.ne.s32.totalorder %s200, %s214
      %p216 = scmp.eq.s32.totalorder %s38, 0
      %p217 = por %p215, %p216
      %s219 = sadd.s32 %s218, 1
      %p222 = scmp.eq.s32.totalorder %s32, 1
      %p223 = scmp.ne.s32.totalorder %s218, %s220
      %p224 = scmp.eq.s32.totalorder %s32, 0
      %p225 = por %p223, %p224
      %p226 = scmp.ne.s32.totalorder %s218, %s220
      %p227 = scmp.eq.s32.totalorder %s37, 1
      %p228 = por %p226, %p227
      %p229 = scmp.ne.s32.totalorder %s220, %s221
      %p230 = scmp.eq.s32.totalorder %s37, 0
      %p231 = por %p229, %p230
      %p232 = scmp.ne.s32.totalorder %s220, %s221
      %p233 = scmp.eq.s32.totalorder %s38, 1
      %p234 = por %p232, %p233
      %p236 = scmp.ne.s32.totalorder %s221, %s235
      %p237 = scmp.eq.s32.totalorder %s38, 0
      %p238 = por %p236, %p237
      %s239 = ssub.s32 %s32, %s39
      %p240 = scmp.eq.s32.totalorder %s239, 0
      %s242 = sadd.s32 %s241, 1
      %s243 = scalar_select %p240, %s241, %s242
      %p246 = pneg %p240
      %p247 = scmp.eq.s32.totalorder %s32, 1
      %p248 = por %p246, %p247
      %p249 = scmp.ne.s32.totalorder %s241, %s244
      %p250 = scmp.eq.s32.totalorder %s32, 0
      %p251 = por %p249, %p250
      %p252 = scmp.ne.s32.totalorder %s241, %s244
      %p253 = scmp.eq.s32.totalorder %s37, 1
      %p254 = por %p252, %p253
      %p255 = scmp.ne.s32.totalorder %s244, %s245
      %p256 = scmp.eq.s32.totalorder %s37, 0
      %p257 = por %p255, %p256
      %p258 = scmp.ne.s32.totalorder %s244, %s245
      %p259 = scmp.eq.s32.totalorder %s38, 1
      %p260 = por %p258, %p259
      %p262 = scmp.ne.s32.totalorder %s245, %s261
      %p263 = scmp.eq.s32.totalorder %s38, 0
      %p264 = por %p262, %p263
      %s265 = ssub.s32 %s32, %s39
      %p266 = scmp.eq.s32.totalorder %s265, 0
      %s268 = sadd.s32 %s267, 1
      %s269 = scalar_select %p266, %s267, %s268
      %p272 = pneg %p266
      %p273 = scmp.eq.s32.totalorder %s32, 1
      %p274 = por %p272, %p273
      %p275 = scmp.ne.s32.totalorder %s267, %s270
      %p276 = scmp.eq.s32.totalorder %s32, 0
      %p277 = por %p275, %p276
      %p278 = scmp.ne.s32.totalorder %s267, %s270
      %p279 = scmp.eq.s32.totalorder %s37, 1
      %p280 = por %p278, %p279
      %p281 = scmp.ne.s32.totalorder %s270, %s271
      %p282 = scmp.eq.s32.totalorder %s37, 0
      %p283 = por %p281, %p282
      %p284 = scmp.ne.s32.totalorder %s270, %s271
      %p285 = scmp.eq.s32.totalorder %s38, 1
      %p286 = por %p284, %p285
      %p288 = scmp.ne.s32.totalorder %s271, %s287
      %p289 = scmp.eq.s32.totalorder %s38, 0
      %p290 = por %p288, %p289
      %p291 = scmp.le.s32.totalorder 1, %s32
      %p292 = scmp.lt.s32.totalorder %s32, 3
      %p293 = pnand %p291, %p292
      %p294 = pneg %p293
      // Predicated region
      $region9: #{tpu_custom_call.1} parent=5 // pred_check
        _
      $region10: #{tpu_custom_call.1} parent=5 // pred_check_branch
        %296 = sbr.rel (%p293) target = $region12
      $region11: #{tpu_custom_call.1} parent=5 // pred_region
        %s297 = ssub.s32 %s32, 1
        // Predicated region
        $region13: #{tpu_custom_call.1} parent=11 // pred_check
          %p298 = pneg %p105
        $region14: #{tpu_custom_call.1} parent=11 // pred_check_branch
          %300 = sbr.rel (%p298) target = $region16
        $region15: #{tpu_custom_call.1} parent=11 // pred_region
          %s302 = ssub.s32 2432, 2432
          %303 = vsyncadd [#allocation8], %s302
          %s304 = sshll.u32 [#allocation9], 4
          %s305 = int_to_ptr.vmem [resolvable:$true] %s304
          %310 = dma.hbm_to_vmem [thread:$0]  %s2, 2432, %s305, [#allocation8], 64, 64, 4
        $region16: #{tpu_custom_call.1} parent=11 // pred_fallthru
          _
        // Predicated region
        $region17: #{tpu_custom_call.1} parent=11 // pred_check
          %p311 = pneg %p126
        $region18: #{tpu_custom_call.1} parent=11 // pred_check_branch
          %313 = sbr.rel (%p311) target = $region20
        $region19: #{tpu_custom_call.1} parent=11 // pred_region
          %s315 = ssub.s32 16, 16
          %316 = vsyncadd [#allocation11], %s315
          %s318 = sshll.u32 [#allocation10], 4
          %s319 = int_to_ptr.vmem [resolvable:$true] %s318
          %321 = dma.hbm_to_vmem [thread:$0]  %s3, 16, %s319, [#allocation11]
        $region20: #{tpu_custom_call.1} parent=11 // pred_fallthru
          _
        // Predicated region
        $region21: #{tpu_custom_call.1} parent=11 // pred_check
          %p322 = pneg %p147
        $region22: #{tpu_custom_call.1} parent=11 // pred_check_branch
          %324 = sbr.rel (%p322) target = $region24
        $region23: #{tpu_custom_call.1} parent=11 // pred_region
          %s326 = ssub.s32 7680, 7680
          %327 = vsyncadd [#allocation11], %s326
          %s328 = sshll.u32 [#allocation12], 4
          %s329 = int_to_ptr.vmem [resolvable:$true] %s328
          %334 = dma.hbm_to_vmem [thread:$0]  %s4, 7680, %s329, [#allocation11], 64, 64, 4
        $region24: #{tpu_custom_call.1} parent=11 // pred_fallthru
          _
        // Predicated region
        $region25: #{tpu_custom_call.1} parent=11 // pred_check
          %p335 = pneg %p168
        $region26: #{tpu_custom_call.1} parent=11 // pred_check_branch
          %337 = sbr.rel (%p335) target = $region28
        $region27: #{tpu_custom_call.1} parent=11 // pred_region
          %s339 = ssub.s32 16, 16
          %340 = vsyncadd [#allocation14], %s339
          %s342 = sshll.u32 [#allocation13], 4
          %s343 = int_to_ptr.vmem [resolvable:$true] %s342
          %345 = dma.hbm_to_vmem [thread:$0]  %s5, 16, %s343, [#allocation14]
        $region28: #{tpu_custom_call.1} parent=11 // pred_fallthru
          _
        // Predicated region
        $region29: #{tpu_custom_call.1} parent=11 // pred_check
          %p346 = pneg %p189
        $region30: #{tpu_custom_call.1} parent=11 // pred_check_branch
          %348 = sbr.rel (%p346) target = $region32
        $region31: #{tpu_custom_call.1} parent=11 // pred_region
          %s350 = ssub.s32 2048, 2048
          %351 = vsyncadd [#allocation14], %s350
          %s352 = sshll.u32 [#allocation15], 4
          %s353 = int_to_ptr.vmem [resolvable:$true] %s352
          %358 = dma.hbm_to_vmem [thread:$0]  %s6, 2048, %s353, [#allocation14], 128, 128, 8
        $region32: #{tpu_custom_call.1} parent=11 // pred_fallthru
          _
        // Predicated region
        $region33: #{tpu_custom_call.1} parent=11 // pred_check
          %p359 = pneg %p210
        $region34: #{tpu_custom_call.1} parent=11 // pred_check_branch
          %361 = sbr.rel (%p359) target = $region36
        $region35: #{tpu_custom_call.1} parent=11 // pred_region
          %s363 = ssub.s32 64, 64
          %364 = vsyncadd [#allocation17], %s363
          %s366 = sshll.u32 [#allocation16], 4
          %s367 = int_to_ptr.vmem [resolvable:$true] %s366
          %369 = dma.hbm_to_vmem [thread:$0]  %s7, 64, %s367, [#allocation17]
        $region36: #{tpu_custom_call.1} parent=11 // pred_fallthru
          _
        // Predicated region
        $region37: #{tpu_custom_call.1} parent=11 // pred_check
          %p370 = pneg %p231
        $region38: #{tpu_custom_call.1} parent=11 // pred_check_branch
          %372 = sbr.rel (%p370) target = $region40
        $region39: #{tpu_custom_call.1} parent=11 // pred_region
          %s374 = ssub.s32 16, 16
          %375 = vsyncadd [#allocation17], %s374
          %s377 = sshll.u32 [#allocation18], 4
          %s378 = int_to_ptr.vmem [resolvable:$true] %s377
          %380 = dma.hbm_to_vmem [thread:$0]  %s8, 16, %s378, [#allocation17]
        $region40: #{tpu_custom_call.1} parent=11 // pred_fallthru
          _
      $region12: #{tpu_custom_call.1} parent=5 // pred_fallthru
        _
      %p381 = scmp.lt.s32.totalorder %s32, 2
      // Predicated region
      $region41: #{tpu_custom_call.1} parent=5 // pred_check
        %p382 = pneg %p381
      $region42: #{tpu_custom_call.1} parent=5 // pred_check_branch
        %384 = sbr.rel (%p382) target = $region44
      $region43: #{tpu_custom_call.1} parent=5 // pred_region
        // Predicated region
        $region45: #{tpu_custom_call.1} parent=43 // pred_check
          %p385 = pneg %p52
        $region46: #{tpu_custom_call.1} parent=43 // pred_check_branch
          %387 = sbr.rel (%p385) target = $region48
        $region47: #{tpu_custom_call.1} parent=43 // pred_region
          %s388 = sand.u32 %s42, 1
          %s389 = scalar_lea.sflag [#allocation5], %s388
          %s390 = sand.u32 %s42, 1
          %s391 = smul.addr %s390, 24
          %s392 = scalar_lea.vmem [#allocation4], %s391
          %s394 = ssub.s32 384, 384
          %395 = vsyncadd %s389, %s394
          %s396 = smul.addr %s32, 6
          %s397 = smul.addr %s396, 64
          %s398 = scalar_lea.hbm %s0, %s397
          %s399 = sshll.u32 %s392, 4
          %s400 = int_to_ptr.vmem [resolvable:$true] %s399
          %405 = dma.hbm_to_vmem [thread:$0]  %s398, 384, %s400, %s389, 192, 192, 12
        $region48: #{tpu_custom_call.1} parent=43 // pred_fallthru
          _
        // Predicated region
        $region49: #{tpu_custom_call.1} parent=43 // pred_check
          %p406 = pneg %p78
        $region50: #{tpu_custom_call.1} parent=43 // pred_check_branch
          %408 = sbr.rel (%p406) target = $region52
        $region51: #{tpu_custom_call.1} parent=43 // pred_region
          %s409 = sand.u32 %s32, 1
          %s410 = scalar_lea.sflag [#allocation8], %s409
          %s411 = sand.u32 %s68, 1
          %s412 = scalar_lea.vmem [#allocation7], %s411
          %s414 = ssub.s32 16, 16
          %415 = vsyncadd %s410, %s414
          %s416 = smul.addr %s32, 16
          %s417 = scalar_lea.hbm %s1, %s416
          %s419 = sshll.u32 %s412, 4
          %s420 = int_to_ptr.vmem [resolvable:$true] %s419
          %422 = dma.hbm_to_vmem [thread:$0]  %s417, 16, %s420, %s410
        $region52: #{tpu_custom_call.1} parent=43 // pred_fallthru
          _
      $region44: #{tpu_custom_call.1} parent=5 // pred_fallthru
        _
      %p423 = scmp.le.s32.totalorder 1, %s32
      %p424 = scmp.lt.s32.totalorder %s32, 3
      %p425 = pnand %p423, %p424
      %p426 = pneg %p425
      // Predicated region
      $region53: #{tpu_custom_call.1} parent=5 // pred_check
        _
      $region54: #{tpu_custom_call.1} parent=5 // pred_check_branch
        %428 = sbr.rel (%p425) target = $region56
      $region55: #{tpu_custom_call.1} parent=5 // pred_region
        %s429 = ssub.s32 %s32, 1
        %s430 = sand.u32 %s45, 1
        %s431 = scalar_lea.sflag [#allocation5], %s430
        %s432 = sand.u32 %s45, 1
        %s433 = smul.addr %s432, 24
        %s434 = scalar_lea.vmem [#allocation4], %s433
        // Predicated region
        $region57: #{tpu_custom_call.1} parent=55 // pred_check
          %p435 = pneg %p58
        $region58: #{tpu_custom_call.1} parent=55 // pred_check_branch
          %437 = sbr.rel (%p435) target = $region60
        $region59: #{tpu_custom_call.1} parent=55 // pred_region
          %438 = dma.done %s431, 384
        $region60: #{tpu_custom_call.1} parent=55 // pred_fallthru
          _
        %s439 = sand.u32 %s37, 1
        %s440 = scalar_lea.sflag [#allocation8], %s439
        %s441 = sand.u32 %s71, 1
        %s442 = scalar_lea.vmem [#allocation7], %s441
        // Predicated region
        $region61: #{tpu_custom_call.1} parent=55 // pred_check
          %p443 = pneg %p84
        $region62: #{tpu_custom_call.1} parent=55 // pred_check_branch
          %445 = sbr.rel (%p443) target = $region64
        $region63: #{tpu_custom_call.1} parent=55 // pred_region
          %446 = dma.done %s440, 16
        $region64: #{tpu_custom_call.1} parent=55 // pred_fallthru
          _
        // Predicated region
        $region65: #{tpu_custom_call.1} parent=55 // pred_check
          %p447 = pneg %p105
        $region66: #{tpu_custom_call.1} parent=55 // pred_check_branch
          %449 = sbr.rel (%p447) target = $region68
        $region67: #{tpu_custom_call.1} parent=55 // pred_region
          %450 = dma.done [#allocation8], 2432
        $region68: #{tpu_custom_call.1} parent=55 // pred_fallthru
          _
        // Predicated region
        $region69: #{tpu_custom_call.1} parent=55 // pred_check
          %p451 = pneg %p126
        $region70: #{tpu_custom_call.1} parent=55 // pred_check_branch
          %453 = sbr.rel (%p451) target = $region72
        $region71: #{tpu_custom_call.1} parent=55 // pred_region
          %454 = dma.done [#allocation11], 16
        $region72: #{tpu_custom_call.1} parent=55 // pred_fallthru
          _
        // Predicated region
        $region73: #{tpu_custom_call.1} parent=55 // pred_check
          %p455 = pneg %p147
        $region74: #{tpu_custom_call.1} parent=55 // pred_check_branch
          %457 = sbr.rel (%p455) target = $region76
        $region75: #{tpu_custom_call.1} parent=55 // pred_region
          %458 = dma.done [#allocation11], 7680
        $region76: #{tpu_custom_call.1} parent=55 // pred_fallthru
          _
        // Predicated region
        $region77: #{tpu_custom_call.1} parent=55 // pred_check
          %p459 = pneg %p168
        $region78: #{tpu_custom_call.1} parent=55 // pred_check_branch
          %461 = sbr.rel (%p459) target = $region80
        $region79: #{tpu_custom_call.1} parent=55 // pred_region
          %462 = dma.done [#allocation14], 16
        $region80: #{tpu_custom_call.1} parent=55 // pred_fallthru
          _
        // Predicated region
        $region81: #{tpu_custom_call.1} parent=55 // pred_check
          %p463 = pneg %p189
        $region82: #{tpu_custom_call.1} parent=55 // pred_check_branch
          %465 = sbr.rel (%p463) target = $region84
        $region83: #{tpu_custom_call.1} parent=55 // pred_region
          %466 = dma.done [#allocation14], 2048
        $region84: #{tpu_custom_call.1} parent=55 // pred_fallthru
          _
        // Predicated region
        $region85: #{tpu_custom_call.1} parent=55 // pred_check
          %p467 = pneg %p210
        $region86: #{tpu_custom_call.1} parent=55 // pred_check_branch
          %469 = sbr.rel (%p467) target = $region88
        $region87: #{tpu_custom_call.1} parent=55 // pred_region
          %470 = dma.done [#allocation17], 64
        $region88: #{tpu_custom_call.1} parent=55 // pred_fallthru
          _
        // Predicated region
        $region89: #{tpu_custom_call.1} parent=55 // pred_check
          %p471 = pneg %p231
        $region90: #{tpu_custom_call.1} parent=55 // pred_check_branch
          %473 = sbr.rel (%p471) target = $region92
        $region91: #{tpu_custom_call.1} parent=55 // pred_region
          %474 = dma.done [#allocation17], 16
        $region92: #{tpu_custom_call.1} parent=55 // pred_fallthru
          _
        %s475 = sand.u32 %s45, 1
        %s476 = scalar_lea.sflag [#allocation5], %s475
        %s477 = sand.u32 %s45, 1
        %s478 = smul.addr %s477, 24
        %s479 = scalar_lea.vmem [#allocation4], %s478
        %p480 = pneg %p58
        %p481 = pneg %p55
        %s482 = sand.u32 %s37, 1
        %s483 = scalar_lea.sflag [#allocation8], %s482
        %s484 = sand.u32 %s71, 1
        %s485 = scalar_lea.vmem [#allocation7], %s484
        %p486 = pneg %p84
        %p487 = pneg %p81
        %p488 = pneg %p105
        %p489 = pneg %p102
        %p490 = pneg %p126
        %p491 = pneg %p123
        %p492 = pneg %p147
        %p493 = pneg %p144
        %p494 = pneg %p168
        %p495 = pneg %p165
        %p496 = pneg %p189
        %p497 = pneg %p186
        %p498 = pneg %p210
        %p499 = pneg %p207
        %p500 = pneg %p231
        %p501 = pneg %p228
        %p502 = pneg %p257
        %p503 = pneg %p254
        %s504 = sand.u32 %s244, 1
        %s505 = scalar_lea.sflag [#allocation6], %s504
        %s506 = sand.u32 %s244, 1
        %s507 = scalar_lea.vmem [#allocation19], %s506
        %p508 = pneg %p283
        %p509 = pneg %p280
        %s510 = sand.u32 %s270, 1
        %s511 = scalar_lea.sflag [#allocation21], %s510
        %s512 = sand.u32 %s270, 1
        %s513 = smul.addr %s512, 4
        %s514 = scalar_lea.vmem [#allocation20], %s513
        %v516 = vld [vmem:[%s434] sm:$0xff]
        %v517 = vld [vmem:[%s434 + $0x8] sm:$0xf]
        %v518 = vld [vmem:[%s434 + $0xc] sm:$0xff]
        %v519 = vld [vmem:[%s434 + $0x14] sm:$0xf]
        %v520 = vld [vmem:[#allocation9] sm:$0xf]
        %v521 = vld [vmem:[#allocation9 + $0x4] sm:$0xf]
        %v522 = vld [vmem:[#allocation9 + $0x8] sm:$0xf]
        %v523 = vld [vmem:[#allocation9 + $0xc] sm:$0xf]
        %v524 = vld [vmem:[#allocation9 + $0x10] sm:$0xf]
        %v525 = vld [vmem:[#allocation9 + $0x14] sm:$0xf]
        %v526 = vld [vmem:[#allocation9 + $0x18] sm:$0xf]
        %v527 = vld [vmem:[#allocation9 + $0x1c] sm:$0xf]
        %v528 = vld [vmem:[#allocation9 + $0x20] sm:$0xf]
        %v529 = vld [vmem:[#allocation9 + $0x24] sm:$0xf]
        %v530 = vld [vmem:[#allocation9 + $0x28] sm:$0xf]
        %v531 = vld [vmem:[#allocation9 + $0x2c] sm:$0xf]
        %v532 = vld [vmem:[#allocation9 + $0x30] sm:$0xf]
        %v533 = vld [vmem:[#allocation9 + $0x34] sm:$0xf]
        %v534 = vld [vmem:[#allocation9 + $0x38] sm:$0xf]
        %v535 = vld [vmem:[#allocation9 + $0x3c] sm:$0xf]
        %v536 = vld [vmem:[#allocation9 + $0x40] sm:$0xf]
        %v537 = vld [vmem:[#allocation9 + $0x44] sm:$0xf]
        %v538 = vld [vmem:[#allocation9 + $0x48] sm:$0xf]
        %v539 = vld [vmem:[#allocation9 + $0x4c] sm:$0xf]
        %v540 = vld [vmem:[#allocation9 + $0x50] sm:$0xf]
        %v541 = vld [vmem:[#allocation9 + $0x54] sm:$0xf]
        %v542 = vld [vmem:[#allocation9 + $0x58] sm:$0xf]
        %v543 = vld [vmem:[#allocation9 + $0x5c] sm:$0xf]
        %v544 = vld [vmem:[#allocation9 + $0x60] sm:$0xf]
        %v545 = vld [vmem:[#allocation9 + $0x64] sm:$0xf]
        %v546 = vld [vmem:[#allocation9 + $0x68] sm:$0xf]
        %v547 = vld [vmem:[#allocation9 + $0x6c] sm:$0xf]
        %v548 = vld [vmem:[#allocation9 + $0x70] sm:$0xf]
        %v549 = vld [vmem:[#allocation9 + $0x74] sm:$0xf]
        %v550 = vld [vmem:[#allocation9 + $0x78] sm:$0xf]
        %v551 = vld [vmem:[#allocation9 + $0x7c] sm:$0xf]
        %v552 = vld [vmem:[#allocation9 + $0x80] sm:$0xf]
        %v553 = vld [vmem:[#allocation9 + $0x84] sm:$0xf]
        %v554 = vld [vmem:[#allocation9 + $0x88] sm:$0xf]
        %v555 = vld [vmem:[#allocation9 + $0x8c] sm:$0xf]
        %v556 = vld [vmem:[#allocation9 + $0x90] sm:$0xf]
        %v557 = vld [vmem:[#allocation9 + $0x94] sm:$0x3]
        %v558 = vld [vmem:[#allocation10] sm:$0x1]
        %v560 = vlaneseq
        %v561 = vshrl.u32 %v560, 7
        %v562 = vsub.s32 0, %v561
        %v563 = vrot.slane %v558, %v562
        %v569 = vunpack.c.l.b16 %v516
        %v570 = vunpack.c.h.b16 %v516
        %v571 = vunpack.c.l.b16 %v517
        %v572 = vunpack.c.l.b16 %v518
        %v573 = vunpack.c.h.b16 %v518
        %v574 = vunpack.c.l.b16 %v519
        %v575 = vpack.c.b16 %v572, %v569
        %v576 = vpack.c.b16 %v573, %v570
        %v577 = vpack.c.b16 %v574, %v571
        %v618 = vunpack.c.l.b16 %v520
        %v619 = vunpack.c.l.b16 %v521
        %v620 = vunpack.c.l.b16 %v522
        %v621 = vunpack.c.l.b16 %v523
        %v622 = vunpack.c.l.b16 %v524
        %v623 = vunpack.c.l.b16 %v525
        %v624 = vunpack.c.l.b16 %v526
        %v625 = vunpack.c.l.b16 %v527
        %v626 = vunpack.c.l.b16 %v528
        %v627 = vunpack.c.l.b16 %v529
        %v628 = vunpack.c.l.b16 %v530
        %v629 = vunpack.c.l.b16 %v531
        %v630 = vunpack.c.l.b16 %v532
        %v631 = vunpack.c.l.b16 %v533
        %v632 = vunpack.c.l.b16 %v534
        %v633 = vunpack.c.l.b16 %v535
        %v634 = vunpack.c.l.b16 %v536
        %v635 = vunpack.c.l.b16 %v537
        %v636 = vunpack.c.l.b16 %v538
        %v637 = vunpack.c.l.b16 %v539
        %v638 = vunpack.c.l.b16 %v540
        %v639 = vunpack.c.l.b16 %v541
        %v640 = vunpack.c.l.b16 %v542
        %v641 = vunpack.c.l.b16 %v543
        %v642 = vunpack.c.l.b16 %v544
        %v643 = vunpack.c.l.b16 %v545
        %v644 = vunpack.c.l.b16 %v546
        %v645 = vunpack.c.l.b16 %v547
        %v646 = vunpack.c.l.b16 %v548
        %v647 = vunpack.c.l.b16 %v549
        %v648 = vunpack.c.l.b16 %v550
        %v649 = vunpack.c.l.b16 %v551
        %v650 = vunpack.c.l.b16 %v552
        %v651 = vunpack.c.l.b16 %v553
        %v652 = vunpack.c.l.b16 %v554
        %v653 = vunpack.c.l.b16 %v555
        %v654 = vunpack.c.l.b16 %v556
        %v655 = vunpack.c.l.b16 %v557
        %v656 = vpack.c.b16 %v619, %v618
        %v657 = vpack.c.b16 %v621, %v620
        %v658 = vpack.c.b16 %v623, %v622
        %v659 = vpack.c.b16 %v625, %v624
        %v660 = vpack.c.b16 %v627, %v626
        %v661 = vpack.c.b16 %v629, %v628
        %v662 = vpack.c.b16 %v631, %v630
        %v663 = vpack.c.b16 %v633, %v632
        %v664 = vpack.c.b16 %v635, %v634
        %v665 = vpack.c.b16 %v637, %v636
        %v666 = vpack.c.b16 %v639, %v638
        %v667 = vpack.c.b16 %v641, %v640
        %v668 = vpack.c.b16 %v643, %v642
        %v669 = vpack.c.b16 %v645, %v644
        %v670 = vpack.c.b16 %v647, %v646
        %v671 = vpack.c.b16 %v649, %v648
        %v672 = vpack.c.b16 %v651, %v650
        %v673 = vpack.c.b16 %v653, %v652
        %v674 = vpack.c.b16 %v655, %v654
        %vm693 = vcmask 359424
        %v695 = vsel %vm693, %v577, 0
        %vm697 = vcmask 1045504
        %v699 = vsel %vm697, %v674, 0
        %701 = vmatprep.subr.bf16.mxu0 0
        %702 = vmatpush1.bf16.msra.mxu0 %v656
        %703 = vmatprep.subr.bf16.mxu0 0
        %704 = vmatpush1.bf16.msra.mxu0 %v657
        %705 = vmatprep.subr.bf16.mxu0 0
        %706 = vmatpush1.bf16.msra.mxu0 %v658
        %707 = vmatprep.subr.bf16.mxu0 0
        %708 = vmatpush1.bf16.msra.mxu0 %v659
        %709 = vmatprep.subr.bf16.mxu0 0
        %710 = vmatpush1.bf16.msra.mxu0 %v660
        %711 = vmatprep.subr.bf16.mxu0 0
        %712 = vmatpush1.bf16.msra.mxu0 %v661
        %713 = vmatprep.subr.bf16.mxu0 0
        %714 = vmatpush1.bf16.msra.mxu0 %v662
        %715 = vmatprep.subr.bf16.mxu0 0
        %716 = vmatpush1.bf16.msra.mxu0 %v663
        %717 = vmatprep.subr.bf16.mxu0 0
        %718 = vmatpush1.bf16.msra.mxu0 %v664
        %719 = vmatprep.subr.bf16.mxu0 0
        %720 = vmatpush1.bf16.msra.mxu0 %v665
        %721 = vmatprep.subr.bf16.mxu0 0
        %722 = vmatpush1.bf16.msra.mxu0 %v666
        %723 = vmatprep.subr.bf16.mxu0 0
        %724 = vmatpush1.bf16.msra.mxu0 %v667
        %725 = vmatprep.subr.bf16.mxu0 0
        %726 = vmatpush1.bf16.msra.mxu0 %v668
        %727 = vmatprep.subr.bf16.mxu0 0
        %728 = vmatpush1.bf16.msra.mxu0 %v669
        %729 = vmatprep.subr.bf16.mxu0 0
        %730 = vmatpush1.bf16.msra.mxu0 %v670
        %731 = vmatprep.subr.bf16.mxu0 0
        %732 = vmatpush1.bf16.msra.mxu0 %v671
        %733 = vmatprep.mubr.bf16.mxu0 %v576
        %734 = vmatmul.mubr.bf16.gmra.mrb[0].mxu0 %v575
        %v735 = vpop.f32.mrb[0].mxu0
        %v736 = vadd.f32 %v563, %v735
        %v737 = vpop.f32.mrb[0].mxu0
        %v738 = vpop.f32.mrb[0].mxu0
        %v739 = vadd.f32 %v563, %v738
        %v740 = vpop.f32.mrb[0].mxu0
        %741 = vdwg.mxu0
        %742 = vmatprep.subr.bf16.mxu0 0
        %743 = vmatpush1.bf16.msra.mxu0 %v672
        %744 = vmatprep.subr.bf16.mxu0 0
        %745 = vmatpush1.bf16.msra.mxu0 %v673
        %746 = vmatprep.subr.bf16.mxu0 0
        %747 = vmatpush1.bf16.msra.mxu0 %v699
        %748 = vmatprep.subr.bf16.mxu0 0
        %749 = vmatpush1.bf16.msra.mxu0 0
        %750 = vmatprep.subr.bf16.mxu0 0
        %751 = vmatpush1.bf16.msra.mxu0 0
        %752 = vmatprep.subr.bf16.mxu0 0
        %753 = vmatpush1.bf16.msra.mxu0 0
        %754 = vmatprep.subr.bf16.mxu0 0
        %755 = vmatpush1.bf16.msra.mxu0 0
        %756 = vmatprep.subr.bf16.mxu0 0
        %757 = vmatpush1.bf16.msra.mxu0 0
        %758 = vmatprep.subr.bf16.mxu0 0
        %759 = vmatpush1.bf16.msra.mxu0 0
        %760 = vmatprep.subr.bf16.mxu0 0
        %761 = vmatpush1.bf16.msra.mxu0 0
        %762 = vmatprep.subr.bf16.mxu0 0
        %763 = vmatpush1.bf16.msra.mxu0 0
        %764 = vmatprep.subr.bf16.mxu0 0
        %765 = vmatpush1.bf16.msra.mxu0 0
        %766 = vmatprep.subr.bf16.mxu0 0
        %767 = vmatpush1.bf16.msra.mxu0 0
        %768 = vmatprep.subr.bf16.mxu0 0
        %769 = vmatpush1.bf16.msra.mxu0 0
        %770 = vmatprep.subr.bf16.mxu0 0
        %771 = vmatpush1.bf16.msra.mxu0 0
        %772 = vmatprep.subr.bf16.mxu0 0
        %773 = vmatpush1.bf16.msra.mxu0 0
        %774 = vmatprep.mubr.bf16.mxu0 0
        %775 = vmatmul.mubr.bf16.gmra.mrb[0].mxu0 %v695
        %v776 = vpop.f32.mrb[0].mxu0
        %v777 = vadd.f32 %v736, %v776
        %v778 = vpop.f32.mrb[0].mxu0
        %v779 = vpop.f32.mrb[0].mxu0
        %v780 = vadd.f32 %v739, %v779
        %v781 = vpop.f32.mrb[0].mxu0
        %782 = vdwg.mxu0
        %v783 = vmax.f32 %v777, 0.0
        %v784 = vmax.f32 %v780, 0.0
        %v785 = vmax.f32 %v783, %v784
        %vm786 = vcmask 522240
        %787 = vst.msk [vmem:[#allocation2] sm:$0x7f] %vm786, 0.0
        %vm788 = vcmask 523264
        %789 = vst.msk [vmem:[#allocation2 + $0x7] sm:$0xff] %vm788, %v785
        %790 = vst.msk [vmem:[#allocation2 + $0xf] sm:$0x7f] %vm786, 0.0
        %v791 = vld [vmem:[#allocation2] sm:$0xff]
        %v792 = vld [vmem:[#allocation2 + $0x1] sm:$0xff]
        %v793 = vld [vmem:[#allocation2 + $0x2] sm:$0xff]
        %v794 = vld [vmem:[#allocation2 + $0x3] sm:$0xff]
        %v795 = vld [vmem:[#allocation2 + $0x4] sm:$0xff]
        %v796 = vld [vmem:[#allocation2 + $0x5] sm:$0xff]
        %v797 = vld [vmem:[#allocation2 + $0x6] sm:$0xff]
        %v798 = vld [vmem:[#allocation2 + $0x7] sm:$0xff]
        %v799 = vld [vmem:[#allocation2 + $0x8] sm:$0xff]
        %v800 = vld [vmem:[#allocation2 + $0x9] sm:$0xff]
        %v801 = vld [vmem:[#allocation2 + $0xa] sm:$0xff]
        %v802 = vld [vmem:[#allocation2 + $0xb] sm:$0xff]
        %v803 = vld [vmem:[#allocation2 + $0xc] sm:$0xff]
        %v804 = vld [vmem:[#allocation2 + $0xd] sm:$0xff]
        %v805 = vld [vmem:[#allocation2 + $0xe] sm:$0xff]
        %807 = vrot.lane.b32.xlu0 %v792, 64
        %v808 = vpop.permute.xlu0 %807
        %811 = vrot.lane.b32.xlu0 %v794, 64
        %v812 = vpop.permute.xlu0 %811
        %815 = vrot.lane.b32.xlu0 %v796, 64
        %v816 = vpop.permute.xlu0 %815
        %819 = vrot.lane.b32.xlu0 %v798, 64
        %v820 = vpop.permute.xlu0 %819
        %823 = vrot.lane.b32.xlu0 %v800, 64
        %v824 = vpop.permute.xlu0 %823
        %827 = vrot.lane.b32.xlu0 %v802, 64
        %v828 = vpop.permute.xlu0 %827
        %831 = vrot.lane.b32.xlu0 %v804, 64
        %v832 = vpop.permute.xlu0 %831
        %v834 = vsel %vm788, %v791, %v808
        %v835 = vsel %vm788, %v793, %v812
        %v836 = vsel %vm788, %v795, %v816
        %v837 = vsel %vm788, %v797, %v820
        %v838 = vsel %vm788, %v799, %v824
        %v839 = vsel %vm788, %v801, %v828
        %v840 = vsel %vm788, %v803, %v832
        %v841 = vpack.c.bf16 %v834, %v834
        %v842 = vpack.c.bf16 %v835, %v835
        %v843 = vpack.c.bf16 %v836, %v836
        %v844 = vpack.c.bf16 %v837, %v837
        %v845 = vpack.c.bf16 %v838, %v838
        %v846 = vpack.c.bf16 %v839, %v839
        %v847 = vpack.c.bf16 %v840, %v840
        %v848 = vpack.c.bf16 %v805, %v805
        %v849 = vld [vmem:[#allocation12] sm:$0xf]
        %v850 = vld [vmem:[#allocation12 + $0x4] sm:$0xf]
        %v851 = vld [vmem:[#allocation12 + $0x8] sm:$0xf]
        %v852 = vld [vmem:[#allocation12 + $0xc] sm:$0xf]
        %v853 = vld [vmem:[#allocation12 + $0x10] sm:$0xf]
        %v854 = vld [vmem:[#allocation12 + $0x14] sm:$0xf]
        %v855 = vld [vmem:[#allocation12 + $0x18] sm:$0xf]
        %v856 = vld [vmem:[#allocation12 + $0x1c] sm:$0xf]
        %v857 = vld [vmem:[#allocation12 + $0x20] sm:$0xf]
        %v858 = vld [vmem:[#allocation12 + $0x24] sm:$0xf]
        %v859 = vld [vmem:[#allocation12 + $0x28] sm:$0xf]
        %v860 = vld [vmem:[#allocation12 + $0x2c] sm:$0xf]
        %v861 = vld [vmem:[#allocation12 + $0x30] sm:$0xf]
        %v862 = vld [vmem:[#allocation12 + $0x34] sm:$0xf]
        %v863 = vld [vmem:[#allocation12 + $0x38] sm:$0xf]
        %v864 = vld [vmem:[#allocation12 + $0x3c] sm:$0xf]
        %v865 = vld [vmem:[#allocation12 + $0x40] sm:$0xf]
        %v866 = vld [vmem:[#allocation12 + $0x44] sm:$0xf]
        %v867 = vld [vmem:[#allocation12 + $0x48] sm:$0xf]
        %v868 = vld [vmem:[#allocation12 + $0x4c] sm:$0xf]
        %v869 = vld [vmem:[#allocation12 + $0x50] sm:$0xf]
        %v870 = vld [vmem:[#allocation12 + $0x54] sm:$0xf]
        %v871 = vld [vmem:[#allocation12 + $0x58] sm:$0xf]
        %v872 = vld [vmem:[#allocation12 + $0x5c] sm:$0xf]
        %v873 = vld [vmem:[#allocation12 + $0x60] sm:$0xf]
        %v874 = vld [vmem:[#allocation12 + $0x64] sm:$0xf]
        %v875 = vld [vmem:[#allocation12 + $0x68] sm:$0xf]
        %v876 = vld [vmem:[#allocation12 + $0x6c] sm:$0xf]
        %v877 = vld [vmem:[#allocation12 + $0x70] sm:$0xf]
        %v878 = vld [vmem:[#allocation12 + $0x74] sm:$0xf]
        %v879 = vld [vmem:[#allocation12 + $0x78] sm:$0xf]
        %v880 = vld [vmem:[#allocation12 + $0x7c] sm:$0xf]
        %v881 = vld [vmem:[#allocation12 + $0x80] sm:$0xf]
        %v882 = vld [vmem:[#allocation12 + $0x84] sm:$0xf]
        %v883 = vld [vmem:[#allocation12 + $0x88] sm:$0xf]
        %v884 = vld [vmem:[#allocation12 + $0x8c] sm:$0xf]
        %v885 = vld [vmem:[#allocation12 + $0x90] sm:$0xf]
        %v886 = vld [vmem:[#allocation12 + $0x94] sm:$0xf]
        %v887 = vld [vmem:[#allocation12 + $0x98] sm:$0xf]
        %v888 = vld [vmem:[#allocation12 + $0x9c] sm:$0xf]
        %v889 = vld [vmem:[#allocation12 + $0xa0] sm:$0xf]
        %v890 = vld [vmem:[#allocation12 + $0xa4] sm:$0xf]
        %v891 = vld [vmem:[#allocation12 + $0xa8] sm:$0xf]
        %v892 = vld [vmem:[#allocation12 + $0xac] sm:$0xf]
        %v893 = vld [vmem:[#allocation12 + $0xb0] sm:$0xf]
        %v894 = vld [vmem:[#allocation12 + $0xb4] sm:$0xf]
        %v895 = vld [vmem:[#allocation12 + $0xb8] sm:$0xf]
        %v896 = vld [vmem:[#allocation12 + $0xbc] sm:$0xf]
        %v897 = vld [vmem:[#allocation12 + $0xc0] sm:$0xf]
        %v898 = vld [vmem:[#allocation12 + $0xc4] sm:$0xf]
        %v899 = vld [vmem:[#allocation12 + $0xc8] sm:$0xf]
        %v900 = vld [vmem:[#allocation12 + $0xcc] sm:$0xf]
        %v901 = vld [vmem:[#allocation12 + $0xd0] sm:$0xf]
        %v902 = vld [vmem:[#allocation12 + $0xd4] sm:$0xf]
        %v903 = vld [vmem:[#allocation12 + $0xd8] sm:$0xf]
        %v904 = vld [vmem:[#allocation12 + $0xdc] sm:$0xf]
        %v905 = vld [vmem:[#allocation12 + $0xe0] sm:$0xf]
        %v906 = vld [vmem:[#allocation12 + $0xe4] sm:$0xf]
        %v907 = vld [vmem:[#allocation12 + $0xe8] sm:$0xf]
        %v908 = vld [vmem:[#allocation12 + $0xec] sm:$0xf]
        %v909 = vld [vmem:[#allocation12 + $0xf0] sm:$0xf]
        %v910 = vld [vmem:[#allocation12 + $0xf4] sm:$0xf]
        %v911 = vld [vmem:[#allocation12 + $0xf8] sm:$0xf]
        %v912 = vld [vmem:[#allocation12 + $0xfc] sm:$0xf]
        %v913 = vld [vmem:[#allocation12 + $0x100] sm:$0xf]
        %v914 = vld [vmem:[#allocation12 + $0x104] sm:$0xf]
        %v915 = vld [vmem:[#allocation12 + $0x108] sm:$0xf]
        %v916 = vld [vmem:[#allocation12 + $0x10c] sm:$0xf]
        %v917 = vld [vmem:[#allocation12 + $0x110] sm:$0xf]
        %v918 = vld [vmem:[#allocation12 + $0x114] sm:$0xf]
        %v919 = vld [vmem:[#allocation12 + $0x118] sm:$0xf]
        %v920 = vld [vmem:[#allocation12 + $0x11c] sm:$0xf]
        %v921 = vld [vmem:[#allocation12 + $0x120] sm:$0xf]
        %v922 = vld [vmem:[#allocation12 + $0x124] sm:$0xf]
        %v923 = vld [vmem:[#allocation12 + $0x128] sm:$0xf]
        %v924 = vld [vmem:[#allocation12 + $0x12c] sm:$0xf]
        %v925 = vld [vmem:[#allocation12 + $0x130] sm:$0xf]
        %v926 = vld [vmem:[#allocation12 + $0x134] sm:$0xf]
        %v927 = vld [vmem:[#allocation12 + $0x138] sm:$0xf]
        %v928 = vld [vmem:[#allocation12 + $0x13c] sm:$0xf]
        %v929 = vld [vmem:[#allocation12 + $0x140] sm:$0xf]
        %v930 = vld [vmem:[#allocation12 + $0x144] sm:$0xf]
        %v931 = vld [vmem:[#allocation12 + $0x148] sm:$0xf]
        %v932 = vld [vmem:[#allocation12 + $0x14c] sm:$0xf]
        %v933 = vld [vmem:[#allocation12 + $0x150] sm:$0xf]
        %v934 = vld [vmem:[#allocation12 + $0x154] sm:$0xf]
        %v935 = vld [vmem:[#allocation12 + $0x158] sm:$0xf]
        %v936 = vld [vmem:[#allocation12 + $0x15c] sm:$0xf]
        %v937 = vld [vmem:[#allocation12 + $0x160] sm:$0xf]
        %v938 = vld [vmem:[#allocation12 + $0x164] sm:$0xf]
        %v939 = vld [vmem:[#allocation12 + $0x168] sm:$0xf]
        %v940 = vld [vmem:[#allocation12 + $0x16c] sm:$0xf]
        %v941 = vld [vmem:[#allocation12 + $0x170] sm:$0xf]
        %v942 = vld [vmem:[#allocation12 + $0x174] sm:$0xf]
        %v943 = vld [vmem:[#allocation12 + $0x178] sm:$0xf]
        %v944 = vld [vmem:[#allocation12 + $0x17c] sm:$0xf]
        %v945 = vld [vmem:[#allocation12 + $0x180] sm:$0xf]
        %v946 = vld [vmem:[#allocation12 + $0x184] sm:$0xf]
        %v947 = vld [vmem:[#allocation12 + $0x188] sm:$0xf]
        %v948 = vld [vmem:[#allocation12 + $0x18c] sm:$0xf]
        %v949 = vld [vmem:[#allocation12 + $0x190] sm:$0xf]
        %v950 = vld [vmem:[#allocation12 + $0x194] sm:$0xf]
        %v951 = vld [vmem:[#allocation12 + $0x198] sm:$0xf]
        %v952 = vld [vmem:[#allocation12 + $0x19c] sm:$0xf]
        %v953 = vld [vmem:[#allocation12 + $0x1a0] sm:$0xf]
        %v954 = vld [vmem:[#allocation12 + $0x1a4] sm:$0xf]
        %v955 = vld [vmem:[#allocation12 + $0x1a8] sm:$0xf]
        %v956 = vld [vmem:[#allocation12 + $0x1ac] sm:$0xf]
        %v957 = vld [vmem:[#allocation12 + $0x1b0] sm:$0xf]
        %v958 = vld [vmem:[#allocation12 + $0x1b4] sm:$0xf]
        %v959 = vld [vmem:[#allocation12 + $0x1b8] sm:$0xf]
        %v960 = vld [vmem:[#allocation12 + $0x1bc] sm:$0xf]
        %v961 = vld [vmem:[#allocation12 + $0x1c0] sm:$0xf]
        %v962 = vld [vmem:[#allocation12 + $0x1c4] sm:$0xf]
        %v963 = vld [vmem:[#allocation12 + $0x1c8] sm:$0xf]
        %v964 = vld [vmem:[#allocation12 + $0x1cc] sm:$0xf]
        %v965 = vld [vmem:[#allocation12 + $0x1d0] sm:$0xf]
        %v966 = vld [vmem:[#allocation12 + $0x1d4] sm:$0xf]
        %v967 = vld [vmem:[#allocation12 + $0x1d8] sm:$0xf]
        %v968 = vld [vmem:[#allocation12 + $0x1dc] sm:$0xf]
        %v969 = vld [vmem:[#allocation13] sm:$0x1]
        %v971 = vlaneseq
        %v972 = vshrl.u32 %v971, 7
        %v973 = vsub.s32 0, %v972
        %v974 = vrot.slane %v969, %v973
        %v1096 = vunpack.c.l.b16 %v849
        %v1097 = vunpack.c.l.b16 %v850
        %v1098 = vunpack.c.l.b16 %v851
        %v1099 = vunpack.c.l.b16 %v852
        %v1100 = vunpack.c.l.b16 %v853
        %v1101 = vunpack.c.l.b16 %v854
        %v1102 = vunpack.c.l.b16 %v855
        %v1103 = vunpack.c.l.b16 %v856
        %v1104 = vunpack.c.l.b16 %v857
        %v1105 = vunpack.c.l.b16 %v858
        %v1106 = vunpack.c.l.b16 %v859
        %v1107 = vunpack.c.l.b16 %v860
        %v1108 = vunpack.c.l.b16 %v861
        %v1109 = vunpack.c.l.b16 %v862
        %v1110 = vunpack.c.l.b16 %v863
        %v1111 = vunpack.c.l.b16 %v864
        %v1112 = vunpack.c.l.b16 %v865
        %v1113 = vunpack.c.l.b16 %v866
        %v1114 = vunpack.c.l.b16 %v867
        %v1115 = vunpack.c.l.b16 %v868
        %v1116 = vunpack.c.l.b16 %v869
        %v1117 = vunpack.c.l.b16 %v870
        %v1118 = vunpack.c.l.b16 %v871
        %v1119 = vunpack.c.l.b16 %v872
        %v1120 = vunpack.c.l.b16 %v873
        %v1121 = vunpack.c.l.b16 %v874
        %v1122 = vunpack.c.l.b16 %v875
        %v1123 = vunpack.c.l.b16 %v876
        %v1124 = vunpack.c.l.b16 %v877
        %v1125 = vunpack.c.l.b16 %v878
        %v1126 = vunpack.c.l.b16 %v879
        %v1127 = vunpack.c.l.b16 %v880
        %v1128 = vunpack.c.l.b16 %v881
        %v1129 = vunpack.c.l.b16 %v882
        %v1130 = vunpack.c.l.b16 %v883
        %v1131 = vunpack.c.l.b16 %v884
        %v1132 = vunpack.c.l.b16 %v885
        %v1133 = vunpack.c.l.b16 %v886
        %v1134 = vunpack.c.l.b16 %v887
        %v1135 = vunpack.c.l.b16 %v888
        %v1136 = vunpack.c.l.b16 %v889
        %v1137 = vunpack.c.l.b16 %v890
        %v1138 = vunpack.c.l.b16 %v891
        %v1139 = vunpack.c.l.b16 %v892
        %v1140 = vunpack.c.l.b16 %v893
        %v1141 = vunpack.c.l.b16 %v894
        %v1142 = vunpack.c.l.b16 %v895
        %v1143 = vunpack.c.l.b16 %v896
        %v1144 = vunpack.c.l.b16 %v897
        %v1145 = vunpack.c.l.b16 %v898
        %v1146 = vunpack.c.l.b16 %v899
        %v1147 = vunpack.c.l.b16 %v900
        %v1148 = vunpack.c.l.b16 %v901
        %v1149 = vunpack.c.l.b16 %v902
        %v1150 = vunpack.c.l.b16 %v903
        %v1151 = vunpack.c.l.b16 %v904
        %v1152 = vunpack.c.l.b16 %v905
        %v1153 = vunpack.c.l.b16 %v906
        %v1154 = vunpack.c.l.b16 %v907
        %v1155 = vunpack.c.l.b16 %v908
        %v1156 = vunpack.c.l.b16 %v909
        %v1157 = vunpack.c.l.b16 %v910
        %v1158 = vunpack.c.l.b16 %v911
        %v1159 = vunpack.c.l.b16 %v912
        %v1160 = vunpack.c.l.b16 %v913
        %v1161 = vunpack.c.l.b16 %v914
        %v1162 = vunpack.c.l.b16 %v915
        %v1163 = vunpack.c.l.b16 %v916
        %v1164 = vunpack.c.l.b16 %v917
        %v1165 = vunpack.c.l.b16 %v918
        %v1166 = vunpack.c.l.b16 %v919
        %v1167 = vunpack.c.l.b16 %v920
        %v1168 = vunpack.c.l.b16 %v921
        %v1169 = vunpack.c.l.b16 %v922
        %v1170 = vunpack.c.l.b16 %v923
        %v1171 = vunpack.c.l.b16 %v924
        %v1172 = vunpack.c.l.b16 %v925
        %v1173 = vunpack.c.l.b16 %v926
        %v1174 = vunpack.c.l.b16 %v927
        %v1175 = vunpack.c.l.b16 %v928
        %v1176 = vunpack.c.l.b16 %v929
        %v1177 = vunpack.c.l.b16 %v930
        %v1178 = vunpack.c.l.b16 %v931
        %v1179 = vunpack.c.l.b16 %v932
        %v1180 = vunpack.c.l.b16 %v933
        %v1181 = vunpack.c.l.b16 %v934
        %v1182 = vunpack.c.l.b16 %v935
        %v1183 = vunpack.c.l.b16 %v936
        %v1184 = vunpack.c.l.b16 %v937
        %v1185 = vunpack.c.l.b16 %v938
        %v1186 = vunpack.c.l.b16 %v939
        %v1187 = vunpack.c.l.b16 %v940
        %v1188 = vunpack.c.l.b16 %v941
        %v1189 = vunpack.c.l.b16 %v942
        %v1190 = vunpack.c.l.b16 %v943
        %v1191 = vunpack.c.l.b16 %v944
        %v1192 = vunpack.c.l.b16 %v945
        %v1193 = vunpack.c.l.b16 %v946
        %v1194 = vunpack.c.l.b16 %v947
        %v1195 = vunpack.c.l.b16 %v948
        %v1196 = vunpack.c.l.b16 %v949
        %v1197 = vunpack.c.l.b16 %v950
        %v1198 = vunpack.c.l.b16 %v951
        %v1199 = vunpack.c.l.b16 %v952
        %v1200 = vunpack.c.l.b16 %v953
        %v1201 = vunpack.c.l.b16 %v954
        %v1202 = vunpack.c.l.b16 %v955
        %v1203 = vunpack.c.l.b16 %v956
        %v1204 = vunpack.c.l.b16 %v957
        %v1205 = vunpack.c.l.b16 %v958
        %v1206 = vunpack.c.l.b16 %v959
        %v1207 = vunpack.c.l.b16 %v960
        %v1208 = vunpack.c.l.b16 %v961
        %v1209 = vunpack.c.l.b16 %v962
        %v1210 = vunpack.c.l.b16 %v963
        %v1211 = vunpack.c.l.b16 %v964
        %v1212 = vunpack.c.l.b16 %v965
        %v1213 = vunpack.c.l.b16 %v966
        %v1214 = vunpack.c.l.b16 %v967
        %v1215 = vunpack.c.l.b16 %v968
        %v1216 = vpack.c.b16 %v1097, %v1096
        %v1217 = vpack.c.b16 %v1099, %v1098
        %v1218 = vpack.c.b16 %v1101, %v1100
        %v1219 = vpack.c.b16 %v1103, %v1102
        %v1220 = vpack.c.b16 %v1105, %v1104
        %v1221 = vpack.c.b16 %v1107, %v1106
        %v1222 = vpack.c.b16 %v1109, %v1108
        %v1223 = vpack.c.b16 %v1111, %v1110
        %v1224 = vpack.c.b16 %v1113, %v1112
        %v1225 = vpack.c.b16 %v1115, %v1114
        %v1226 = vpack.c.b16 %v1117, %v1116
        %v1227 = vpack.c.b16 %v1119, %v1118
        %v1228 = vpack.c.b16 %v1121, %v1120
        %v1229 = vpack.c.b16 %v1123, %v1122
        %v1230 = vpack.c.b16 %v1125, %v1124
        %v1231 = vpack.c.b16 %v1127, %v1126
        %v1232 = vpack.c.b16 %v1129, %v1128
        %v1233 = vpack.c.b16 %v1131, %v1130
        %v1234 = vpack.c.b16 %v1133, %v1132
        %v1235 = vpack.c.b16 %v1135, %v1134
        %v1236 = vpack.c.b16 %v1137, %v1136
        %v1237 = vpack.c.b16 %v1139, %v1138
        %v1238 = vpack.c.b16 %v1141, %v1140
        %v1239 = vpack.c.b16 %v1143, %v1142
        %v1240 = vpack.c.b16 %v1145, %v1144
        %v1241 = vpack.c.b16 %v1147, %v1146
        %v1242 = vpack.c.b16 %v1149, %v1148
        %v1243 = vpack.c.b16 %v1151, %v1150
        %v1244 = vpack.c.b16 %v1153, %v1152
        %v1245 = vpack.c.b16 %v1155, %v1154
        %v1246 = vpack.c.b16 %v1157, %v1156
        %v1247 = vpack.c.b16 %v1159, %v1158
        %v1248 = vpack.c.b16 %v1161, %v1160
        %v1249 = vpack.c.b16 %v1163, %v1162
        %v1250 = vpack.c.b16 %v1165, %v1164
        %v1251 = vpack.c.b16 %v1167, %v1166
        %v1252 = vpack.c.b16 %v1169, %v1168
        %v1253 = vpack.c.b16 %v1171, %v1170
        %v1254 = vpack.c.b16 %v1173, %v1172
        %v1255 = vpack.c.b16 %v1175, %v1174
        %v1256 = vpack.c.b16 %v1177, %v1176
        %v1257 = vpack.c.b16 %v1179, %v1178
        %v1258 = vpack.c.b16 %v1181, %v1180
        %v1259 = vpack.c.b16 %v1183, %v1182
        %v1260 = vpack.c.b16 %v1185, %v1184
        %v1261 = vpack.c.b16 %v1187, %v1186
        %v1262 = vpack.c.b16 %v1189, %v1188
        %v1263 = vpack.c.b16 %v1191, %v1190
        %v1264 = vpack.c.b16 %v1193, %v1192
        %v1265 = vpack.c.b16 %v1195, %v1194
        %v1266 = vpack.c.b16 %v1197, %v1196
        %v1267 = vpack.c.b16 %v1199, %v1198
        %v1268 = vpack.c.b16 %v1201, %v1200
        %v1269 = vpack.c.b16 %v1203, %v1202
        %v1270 = vpack.c.b16 %v1205, %v1204
        %v1271 = vpack.c.b16 %v1207, %v1206
        %v1272 = vpack.c.b16 %v1209, %v1208
        %v1273 = vpack.c.b16 %v1211, %v1210
        %v1274 = vpack.c.b16 %v1213, %v1212
        %v1275 = vpack.c.b16 %v1215, %v1214
        %v1337 = vsel %vm788, %v848, 0
        %1339 = vmatprep.subr.bf16.mxu0 0
        %1340 = vmatpush1.bf16.msra.mxu0 %v1216
        %1341 = vmatprep.subr.bf16.mxu0 0
        %1342 = vmatpush1.bf16.msra.mxu0 %v1217
        %1343 = vmatprep.subr.bf16.mxu0 0
        %1344 = vmatpush1.bf16.msra.mxu0 %v1218
        %1345 = vmatprep.subr.bf16.mxu0 0
        %1346 = vmatpush1.bf16.msra.mxu0 %v1219
        %1347 = vmatprep.subr.bf16.mxu0 0
        %1348 = vmatpush1.bf16.msra.mxu0 %v1220
        %1349 = vmatprep.subr.bf16.mxu0 0
        %1350 = vmatpush1.bf16.msra.mxu0 %v1221
        %1351 = vmatprep.subr.bf16.mxu0 0
        %1352 = vmatpush1.bf16.msra.mxu0 %v1222
        %1353 = vmatprep.subr.bf16.mxu0 0
        %1354 = vmatpush1.bf16.msra.mxu0 %v1223
        %1355 = vmatprep.subr.bf16.mxu0 0
        %1356 = vmatpush1.bf16.msra.mxu0 %v1224
        %1357 = vmatprep.subr.bf16.mxu0 0
        %1358 = vmatpush1.bf16.msra.mxu0 %v1225
        %1359 = vmatprep.subr.bf16.mxu0 0
        %1360 = vmatpush1.bf16.msra.mxu0 %v1226
        %1361 = vmatprep.subr.bf16.mxu0 0
        %1362 = vmatpush1.bf16.msra.mxu0 %v1227
        %1363 = vmatprep.subr.bf16.mxu0 0
        %1364 = vmatpush1.bf16.msra.mxu0 %v1228
        %1365 = vmatprep.subr.bf16.mxu0 0
        %1366 = vmatpush1.bf16.msra.mxu0 %v1229
        %1367 = vmatprep.subr.bf16.mxu0 0
        %1368 = vmatpush1.bf16.msra.mxu0 %v1230
        %1369 = vmatprep.subr.bf16.mxu0 0
        %1370 = vmatpush1.bf16.msra.mxu0 %v1231
        %1371 = vmatprep.mubr.bf16.mxu0 %v842
        %1372 = vmatmul.mubr.bf16.gmra.mrb[0].mxu0 %v841
        %v1373 = vpop.f32.mrb[0].mxu0
        %v1374 = vadd.f32 %v974, %v1373
        %v1375 = vpop.f32.mrb[0].mxu0
        %v1376 = vpop.f32.mrb[0].mxu0
        %v1377 = vpop.f32.mrb[0].mxu0
        %1378 = vdwg.mxu0
        %1379 = vmatprep.subr.bf16.mxu0 0
        %1380 = vmatpush1.bf16.msra.mxu0 %v1232
        %1381 = vmatprep.subr.bf16.mxu0 0
        %1382 = vmatpush1.bf16.msra.mxu0 %v1233
        %1383 = vmatprep.subr.bf16.mxu0 0
        %1384 = vmatpush1.bf16.msra.mxu0 %v1234
        %1385 = vmatprep.subr.bf16.mxu0 0
        %1386 = vmatpush1.bf16.msra.mxu0 %v1235
        %1387 = vmatprep.subr.bf16.mxu0 0
        %1388 = vmatpush1.bf16.msra.mxu0 %v1236
        %1389 = vmatprep.subr.bf16.mxu0 0
        %1390 = vmatpush1.bf16.msra.mxu0 %v1237
        %1391 = vmatprep.subr.bf16.mxu0 0
        %1392 = vmatpush1.bf16.msra.mxu0 %v1238
        %1393 = vmatprep.subr.bf16.mxu0 0
        %1394 = vmatpush1.bf16.msra.mxu0 %v1239
        %1395 = vmatprep.subr.bf16.mxu0 0
        %1396 = vmatpush1.bf16.msra.mxu0 %v1240
        %1397 = vmatprep.subr.bf16.mxu0 0
        %1398 = vmatpush1.bf16.msra.mxu0 %v1241
        %1399 = vmatprep.subr.bf16.mxu0 0
        %1400 = vmatpush1.bf16.msra.mxu0 %v1242
        %1401 = vmatprep.subr.bf16.mxu0 0
        %1402 = vmatpush1.bf16.msra.mxu0 %v1243
        %1403 = vmatprep.subr.bf16.mxu0 0
        %1404 = vmatpush1.bf16.msra.mxu0 %v1244
        %1405 = vmatprep.subr.bf16.mxu0 0
        %1406 = vmatpush1.bf16.msra.mxu0 %v1245
        %1407 = vmatprep.subr.bf16.mxu0 0
        %1408 = vmatpush1.bf16.msra.mxu0 %v1246
        %1409 = vmatprep.subr.bf16.mxu0 0
        %1410 = vmatpush1.bf16.msra.mxu0 %v1247
        %1411 = vmatprep.mubr.bf16.mxu0 %v844
        %1412 = vmatmul.mubr.bf16.gmra.mrb[0].mxu0 %v843
        %v1413 = vpop.f32.mrb[0].mxu0
        %v1414 = vadd.f32 %v1374, %v1413
        %v1415 = vpop.f32.mrb[0].mxu0
        %v1416 = vpop.f32.mrb[0].mxu0
        %v1417 = vpop.f32.mrb[0].mxu0
        %1418 = vdwg.mxu0
        %1419 = vmatprep.subr.bf16.mxu0 0
        %1420 = vmatpush1.bf16.msra.mxu0 %v1248
        %1421 = vmatprep.subr.bf16.mxu0 0
        %1422 = vmatpush1.bf16.msra.mxu0 %v1249
        %1423 = vmatprep.subr.bf16.mxu0 0
        %1424 = vmatpush1.bf16.msra.mxu0 %v1250
        %1425 = vmatprep.subr.bf16.mxu0 0
        %1426 = vmatpush1.bf16.msra.mxu0 %v1251
        %1427 = vmatprep.subr.bf16.mxu0 0
        %1428 = vmatpush1.bf16.msra.mxu0 %v1252
        %1429 = vmatprep.subr.bf16.mxu0 0
        %1430 = vmatpush1.bf16.msra.mxu0 %v1253
        %1431 = vmatprep.subr.bf16.mxu0 0
        %1432 = vmatpush1.bf16.msra.mxu0 %v1254
        %1433 = vmatprep.subr.bf16.mxu0 0
        %1434 = vmatpush1.bf16.msra.mxu0 %v1255
        %1435 = vmatprep.subr.bf16.mxu0 0
        %1436 = vmatpush1.bf16.msra.mxu0 %v1256
        %1437 = vmatprep.subr.bf16.mxu0 0
        %1438 = vmatpush1.bf16.msra.mxu0 %v1257
        %1439 = vmatprep.subr.bf16.mxu0 0
        %1440 = vmatpush1.bf16.msra.mxu0 %v1258
        %1441 = vmatprep.subr.bf16.mxu0 0
        %1442 = vmatpush1.bf16.msra.mxu0 %v1259
        %1443 = vmatprep.subr.bf16.mxu0 0
        %1444 = vmatpush1.bf16.msra.mxu0 %v1260
        %1445 = vmatprep.subr.bf16.mxu0 0
        %1446 = vmatpush1.bf16.msra.mxu0 %v1261
        %1447 = vmatprep.subr.bf16.mxu0 0
        %1448 = vmatpush1.bf16.msra.mxu0 %v1262
        %1449 = vmatprep.subr.bf16.mxu0 0
        %1450 = vmatpush1.bf16.msra.mxu0 %v1263
        %1451 = vmatprep.mubr.bf16.mxu0 %v846
        %1452 = vmatmul.mubr.bf16.gmra.mrb[0].mxu0 %v845
        %v1453 = vpop.f32.mrb[0].mxu0
        %v1454 = vadd.f32 %v1414, %v1453
        %v1455 = vpop.f32.mrb[0].mxu0
        %v1456 = vpop.f32.mrb[0].mxu0
        %v1457 = vpop.f32.mrb[0].mxu0
        %1458 = vdwg.mxu0
        %1459 = vmatprep.subr.bf16.mxu0 0
        %1460 = vmatpush1.bf16.msra.mxu0 %v1264
        %1461 = vmatprep.subr.bf16.mxu0 0
        %1462 = vmatpush1.bf16.msra.mxu0 %v1265
        %1463 = vmatprep.subr.bf16.mxu0 0
        %1464 = vmatpush1.bf16.msra.mxu0 %v1266
        %1465 = vmatprep.subr.bf16.mxu0 0
        %1466 = vmatpush1.bf16.msra.mxu0 %v1267
        %1467 = vmatprep.subr.bf16.mxu0 0
        %1468 = vmatpush1.bf16.msra.mxu0 %v1268
        %1469 = vmatprep.subr.bf16.mxu0 0
        %1470 = vmatpush1.bf16.msra.mxu0 %v1269
        %1471 = vmatprep.subr.bf16.mxu0 0
        %1472 = vmatpush1.bf16.msra.mxu0 %v1270
        %1473 = vmatprep.subr.bf16.mxu0 0
        %1474 = vmatpush1.bf16.msra.mxu0 %v1271
        %1475 = vmatprep.subr.bf16.mxu0 0
        %1476 = vmatpush1.bf16.msra.mxu0 %v1272
        %1477 = vmatprep.subr.bf16.mxu0 0
        %1478 = vmatpush1.bf16.msra.mxu0 %v1273
        %1479 = vmatprep.subr.bf16.mxu0 0
        %1480 = vmatpush1.bf16.msra.mxu0 %v1274
        %1481 = vmatprep.subr.bf16.mxu0 0
        %1482 = vmatpush1.bf16.msra.mxu0 %v1275
        %1483 = vmatprep.subr.bf16.mxu0 0
        %1484 = vmatpush1.bf16.msra.mxu0 0
        %1485 = vmatprep.subr.bf16.mxu0 0
        %1486 = vmatpush1.bf16.msra.mxu0 0
        %1487 = vmatprep.subr.bf16.mxu0 0
        %1488 = vmatpush1.bf16.msra.mxu0 0
        %1489 = vmatprep.subr.bf16.mxu0 0
        %1490 = vmatpush1.bf16.msra.mxu0 0
        %1491 = vmatprep.mubr.bf16.mxu0 %v1337
        %1492 = vmatmul.mubr.bf16.gmra.mrb[0].mxu0 %v847
        %v1493 = vpop.f32.mrb[0].mxu0
        %v1494 = vadd.f32 %v1454, %v1493
        %v1495 = vpop.f32.mrb[0].mxu0
        %v1496 = vpop.f32.mrb[0].mxu0
        %v1497 = vpop.f32.mrb[0].mxu0
        %1498 = vdwg.mxu0
        %v1499 = vmax.f32 %v1494, 0.0
        %1500 = vst [vmem:[#allocation3] sm:$0xff] %v1499
        %v1501 = vld [vmem:[#allocation3] ss:$2 sm:$0xf]
        %s1502 = scalar_lea.vmem [#allocation3], 1
        %v1503 = vld [vmem:[%s1502] ss:$2 sm:$0xf]
        %v1504 = vmax.f32 %v1501, %v1503
        %1505 = vst [vmem:[%s514] sm:$0xf] %v1504
        %vm1506 = vcmask 1043456
        %v1507 = vsel %vm1506, %v1504, 0.0
        %v1508 = vrot.slane %v1507, 4
        %v1509 = vadd.f32 %v1507, %v1508
        %v1510 = vrot.slane %v1509, 2
        %v1511 = vadd.f32 %v1509, %v1510
        %v1512 = vrot.slane %v1511, 1
        %v1513 = vadd.f32 %v1511, %v1512
        %v1514 = vrcp.pop 4.0
        %v1515 = vmul.f32 %v1513, %v1514
        %v1516 = vld [vmem:[#allocation15] sm:$0xff]
        %v1517 = vld [vmem:[#allocation15 + $0x8] sm:$0xff]
        %v1518 = vld [vmem:[#allocation15 + $0x10] sm:$0xff]
        %v1519 = vld [vmem:[#allocation15 + $0x18] sm:$0xff]
        %v1520 = vld [vmem:[#allocation15 + $0x20] sm:$0xff]
        %v1521 = vld [vmem:[#allocation15 + $0x28] sm:$0xff]
        %v1522 = vld [vmem:[#allocation15 + $0x30] sm:$0xff]
        %v1523 = vld [vmem:[#allocation15 + $0x38] sm:$0xff]
        %v1524 = vld [vmem:[#allocation15 + $0x40] sm:$0xff]
        %v1525 = vld [vmem:[#allocation15 + $0x48] sm:$0xff]
        %v1526 = vld [vmem:[#allocation15 + $0x50] sm:$0xff]
        %v1527 = vld [vmem:[#allocation15 + $0x58] sm:$0xff]
        %v1528 = vld [vmem:[#allocation15 + $0x60] sm:$0xff]
        %v1529 = vld [vmem:[#allocation15 + $0x68] sm:$0xff]
        %v1530 = vld [vmem:[#allocation15 + $0x70] sm:$0xff]
        %v1531 = vld [vmem:[#allocation15 + $0x78] sm:$0xff]
        %v1532 = vld [vmem:[%s442] sm:$0x1]
        %v1533 = vld [vmem:[#allocation16] sm:$0xf]
        %vm1534 = vcmask 31744
        %v1536 = vsel %vm1534, %v1532, 0
        %v1539 = vsel %vm1506, %v1533, 0
        %1541 = vmatprep.subr.mxu0 0.0
        %1542 = vmatpush1.msra.mxu0 %v1539
        %1543 = vmatprep.subr.mxu0 0.0
        %1544 = vmatpush1.msra.mxu0 0.0
        %1545 = vmatprep.subr.mxu0 0.0
        %1546 = vmatpush1.msra.mxu0 0.0
        %1547 = vmatprep.subr.mxu0 0.0
        %1548 = vmatpush1.msra.mxu0 0.0
        %1549 = vmatprep.subr.mxu0 0.0
        %1550 = vmatpush1.msra.mxu0 0.0
        %1551 = vmatprep.subr.mxu0 0.0
        %1552 = vmatpush1.msra.mxu0 0.0
        %1553 = vmatprep.subr.mxu0 0.0
        %1554 = vmatpush1.msra.mxu0 0.0
        %1555 = vmatprep.subr.mxu0 0.0
        %1556 = vmatpush1.msra.mxu0 0.0
        %1557 = vmatprep.subr.mxu0 0.0
        %1558 = vmatpush1.msra.mxu0 0.0
        %1559 = vmatprep.subr.mxu0 0.0
        %1560 = vmatpush1.msra.mxu0 0.0
        %1561 = vmatprep.subr.mxu0 0.0
        %1562 = vmatpush1.msra.mxu0 0.0
        %1563 = vmatprep.subr.mxu0 0.0
        %1564 = vmatpush1.msra.mxu0 0.0
        %1565 = vmatprep.subr.mxu0 0.0
        %1566 = vmatpush1.msra.mxu0 0.0
        %1567 = vmatprep.subr.mxu0 0.0
        %1568 = vmatpush1.msra.mxu0 0.0
        %1569 = vmatprep.subr.mxu0 0.0
        %1570 = vmatpush1.msra.mxu0 0.0
        %1571 = vmatprep.subr.mxu0 0.0
        %1572 = vmatpush1.msra.mxu0 0.0
        %1573 = vmatprep.subr.mxu0 0.0
        %1574 = vmatpush1.msra.mxu0 0.0
        %1575 = vmatprep.subr.mxu0 0.0
        %1576 = vmatpush1.msra.mxu0 0.0
        %1577 = vmatprep.subr.mxu0 0.0
        %1578 = vmatpush1.msra.mxu0 0.0
        %1579 = vmatprep.subr.mxu0 0.0
        %1580 = vmatpush1.msra.mxu0 0.0
        %1581 = vmatprep.subr.mxu0 0.0
        %1582 = vmatpush1.msra.mxu0 0.0
        %1583 = vmatprep.subr.mxu0 0.0
        %1584 = vmatpush1.msra.mxu0 0.0
        %1585 = vmatprep.subr.mxu0 0.0
        %1586 = vmatpush1.msra.mxu0 0.0
        %1587 = vmatprep.subr.mxu0 0.0
        %1588 = vmatpush1.msra.mxu0 0.0
        %1589 = vmatprep.subr.mxu0 0.0
        %1590 = vmatpush1.msra.mxu0 0.0
        %1591 = vmatprep.subr.mxu0 0.0
        %1592 = vmatpush1.msra.mxu0 0.0
        %1593 = vmatprep.subr.mxu0 0.0
        %1594 = vmatpush1.msra.mxu0 0.0
        %1595 = vmatprep.subr.mxu0 0.0
        %1596 = vmatpush1.msra.mxu0 0.0
        %1597 = vmatprep.subr.mxu0 0.0
        %1598 = vmatpush1.msra.mxu0 0.0
        %1599 = vmatprep.subr.mxu0 0.0
        %1600 = vmatpush1.msra.mxu0 0.0
        %1601 = vmatprep.subr.mxu0 0.0
        %1602 = vmatpush1.msra.mxu0 0.0
        %1603 = vmatprep.subr.mxu0 0.0
        %1604 = vmatpush1.msra.mxu0 0.0
        %1605 = vmatprep.mubr.f32.mxu0 0.0
        %1606 = vmatmul.mubr.f32.gmra.mrb[0].mxu0 %v1536
        %v1607 = vpop.f32.mrb[0].mxu0
        %v1608 = vadd.f32 0.0, %v1607
        %v1609 = vpop.f32.mrb[0].mxu0
        %1610 = vdwg.mxu0
        %1611 = vmatprep.subr.mxu0 0.0
        %1612 = vmatpush1.msra.mxu0 %v1516
        %1613 = vmatprep.subr.mxu0 0.0
        %1614 = vmatpush1.msra.mxu0 %v1517
        %1615 = vmatprep.subr.mxu0 0.0
        %1616 = vmatpush1.msra.mxu0 %v1518
        %1617 = vmatprep.subr.mxu0 0.0
        %1618 = vmatpush1.msra.mxu0 %v1519
        %1619 = vmatprep.subr.mxu0 0.0
        %1620 = vmatpush1.msra.mxu0 %v1520
        %1621 = vmatprep.subr.mxu0 0.0
        %1622 = vmatpush1.msra.mxu0 %v1521
        %1623 = vmatprep.subr.mxu0 0.0
        %1624 = vmatpush1.msra.mxu0 %v1522
        %1625 = vmatprep.subr.mxu0 0.0
        %1626 = vmatpush1.msra.mxu0 %v1523
        %1627 = vmatprep.subr.mxu0 0.0
        %1628 = vmatpush1.msra.mxu0 %v1524
        %1629 = vmatprep.subr.mxu0 0.0
        %1630 = vmatpush1.msra.mxu0 %v1525
        %1631 = vmatprep.subr.mxu0 0.0
        %1632 = vmatpush1.msra.mxu0 %v1526
        %1633 = vmatprep.subr.mxu0 0.0
        %1634 = vmatpush1.msra.mxu0 %v1527
        %1635 = vmatprep.subr.mxu0 0.0
        %1636 = vmatpush1.msra.mxu0 %v1528
        %1637 = vmatprep.subr.mxu0 0.0
        %1638 = vmatpush1.msra.mxu0 %v1529
        %1639 = vmatprep.subr.mxu0 0.0
        %1640 = vmatpush1.msra.mxu0 %v1530
        %1641 = vmatprep.subr.mxu0 0.0
        %1642 = vmatpush1.msra.mxu0 %v1531
        %1643 = vmatprep.subr.mxu0 0.0
        %1644 = vmatpush1.msra.mxu0 0.0
        %1645 = vmatprep.subr.mxu0 0.0
        %1646 = vmatpush1.msra.mxu0 0.0
        %1647 = vmatprep.subr.mxu0 0.0
        %1648 = vmatpush1.msra.mxu0 0.0
        %1649 = vmatprep.subr.mxu0 0.0
        %1650 = vmatpush1.msra.mxu0 0.0
        %1651 = vmatprep.subr.mxu0 0.0
        %1652 = vmatpush1.msra.mxu0 0.0
        %1653 = vmatprep.subr.mxu0 0.0
        %1654 = vmatpush1.msra.mxu0 0.0
        %1655 = vmatprep.subr.mxu0 0.0
        %1656 = vmatpush1.msra.mxu0 0.0
        %1657 = vmatprep.subr.mxu0 0.0
        %1658 = vmatpush1.msra.mxu0 0.0
        %1659 = vmatprep.subr.mxu0 0.0
        %1660 = vmatpush1.msra.mxu0 0.0
        %1661 = vmatprep.subr.mxu0 0.0
        %1662 = vmatpush1.msra.mxu0 0.0
        %1663 = vmatprep.subr.mxu0 0.0
        %1664 = vmatpush1.msra.mxu0 0.0
        %1665 = vmatprep.subr.mxu0 0.0
        %1666 = vmatpush1.msra.mxu0 0.0
        %1667 = vmatprep.subr.mxu0 0.0
        %1668 = vmatpush1.msra.mxu0 0.0
        %1669 = vmatprep.subr.mxu0 0.0
        %1670 = vmatpush1.msra.mxu0 0.0
        %1671 = vmatprep.subr.mxu0 0.0
        %1672 = vmatpush1.msra.mxu0 0.0
        %1673 = vmatprep.subr.mxu0 0.0
        %1674 = vmatpush1.msra.mxu0 0.0
        %1675 = vmatprep.mubr.f32.mxu0 0.0
        %1676 = vmatmul.mubr.f32.gmra.mrb[0].mxu0 %v1515
        %v1677 = vpop.f32.mrb[0].mxu0
        %v1678 = vadd.f32 %v1608, %v1677
        %v1679 = vpop.f32.mrb[0].mxu0
        %1680 = vdwg.mxu0
        %v1681 = vld [vmem:[#allocation18] sm:$0x1]
        %v1682 = vadd.f32 %v1678, %v1681
        %vm1683 = vcmask 8192
        %1684 = vst.msk [vmem:[%s507] sm:$0x1] %vm1683, %v1682
        %s1685 = sand.u32 %s244, 1
        %s1686 = scalar_lea.sflag [#allocation6], %s1685
        %s1687 = sand.u32 %s244, 1
        %s1688 = scalar_lea.vmem [#allocation19], %s1687
        %s1689 = sand.u32 %s270, 1
        %s1690 = scalar_lea.sflag [#allocation21], %s1689
        %s1691 = sand.u32 %s270, 1
        %s1692 = smul.addr %s1691, 4
        %s1693 = scalar_lea.vmem [#allocation20], %s1692
        // Predicated region
        $region93: #{tpu_custom_call.1} parent=55 // pred_check
          %p1694 = pneg %p254
        $region94: #{tpu_custom_call.1} parent=55 // pred_check_branch
          %1696 = sbr.rel (%p1694) target = $region96
        $region95: #{tpu_custom_call.1} parent=55 // pred_region
          %s1698 = ssub.s32 16, 16
          %1699 = vsyncadd %s1686, %s1698
          %s1700 = smul.addr %s37, 16
          %s1701 = scalar_lea.hbm %s9, %s1700
          %s1703 = sshll.u32 %s1688, 4
          %s1704 = int_to_ptr.vmem [resolvable:$true] %s1703
          %1706 = dma.vmem_to_hbm [thread:$0]  %s1704, 16, %s1701, %s1686
        $region96: #{tpu_custom_call.1} parent=55 // pred_fallthru
          _
        // Predicated region
        $region97: #{tpu_custom_call.1} parent=55 // pred_check
          %p1707 = pneg %p280
        $region98: #{tpu_custom_call.1} parent=55 // pred_check_branch
          %1709 = sbr.rel (%p1707) target = $region100
        $region99: #{tpu_custom_call.1} parent=55 // pred_region
          %s1711 = ssub.s32 64, 64
          %1712 = vsyncadd %s1690, %s1711
          %s1713 = smul.addr %s37, 64
          %s1714 = scalar_lea.hbm %s10, %s1713
          %s1716 = sshll.u32 %s1693, 4
          %s1717 = int_to_ptr.vmem [resolvable:$true] %s1716
          %1719 = dma.vmem_to_hbm [thread:$0]  %s1717, 64, %s1714, %s1690
        $region100: #{tpu_custom_call.1} parent=55 // pred_fallthru
          _
      $region56: #{tpu_custom_call.1} parent=5 // pred_fallthru
        _
      %p1720 = scmp.le.s32.totalorder 2, %s32
      // Predicated region
      $region101: #{tpu_custom_call.1} parent=5 // pred_check
        %p1721 = pneg %p1720
      $region102: #{tpu_custom_call.1} parent=5 // pred_check_branch
        %1723 = sbr.rel (%p1721) target = $region104
      $region103: #{tpu_custom_call.1} parent=5 // pred_region
        %s1724 = ssub.s32 %s32, 2
        // Predicated region
        $region105: #{tpu_custom_call.1} parent=103 // pred_check
          %p1725 = pneg %p260
        $region106: #{tpu_custom_call.1} parent=103 // pred_check_branch
          %1727 = sbr.rel (%p1725) target = $region108
        $region107: #{tpu_custom_call.1} parent=103 // pred_region
          %s1728 = sand.u32 %s245, 1
          %s1729 = scalar_lea.sflag [#allocation6], %s1728
          %s1730 = sand.u32 %s245, 1
          %s1731 = scalar_lea.vmem [#allocation19], %s1730
          %1732 = dma.done %s1729, 16
        $region108: #{tpu_custom_call.1} parent=103 // pred_fallthru
          _
        // Predicated region
        $region109: #{tpu_custom_call.1} parent=103 // pred_check
          %p1733 = pneg %p286
        $region110: #{tpu_custom_call.1} parent=103 // pred_check_branch
          %1735 = sbr.rel (%p1733) target = $region112
        $region111: #{tpu_custom_call.1} parent=103 // pred_region
          %s1736 = sand.u32 %s271, 1
          %s1737 = scalar_lea.sflag [#allocation21], %s1736
          %s1738 = sand.u32 %s271, 1
          %s1739 = smul.addr %s1738, 4
          %s1740 = scalar_lea.vmem [#allocation20], %s1739
          %1741 = dma.done %s1737, 64
        $region112: #{tpu_custom_call.1} parent=103 // pred_fallthru
          _
      $region104: #{tpu_custom_call.1} parent=5 // pred_fallthru
        _
    $region6: #{tpu_custom_call.1} parent=1 // loop_footer
      %s36 = sadd.s32 1, %s32
    $region7: #{tpu_custom_call.1} parent=1 // loop_footer_branch
      %31 = sbr.rel target = $region3
    $region8: #{tpu_custom_call.1} parent=1 // loop_exit
      _
    %1742 = vsyncpa [#allocation5], 1
    %s1743 = scalar_lea.sflag [#allocation5], 1
    %1744 = vsyncpa %s1743, 1
    %1745 = vsyncpa [#allocation8], 1
    %s1746 = scalar_lea.sflag [#allocation8], 1
    %1747 = vsyncpa %s1746, 1
    %1748 = vsyncpa [#allocation11], 1
    %1749 = vsyncpa [#allocation14], 1
    %1750 = vsyncpa [#allocation17], 1
    %1751 = vsyncpa [#allocation6], 1
    %s1752 = scalar_lea.sflag [#allocation6], 1
    %1753 = vsyncpa %s1752, 1
    %1754 = vsyncpa [#allocation21], 1
    %s1755 = scalar_lea.sflag [#allocation21], 1
    %1756 = vsyncpa %s1755, 1

</llo_original>
